<compile_context>
chip_gen: v7x
topology: tpu7x:2x2x1
jax: 0.10.0
libtpu: 0.0.40
codegen_flags: <defaults>
</compile_context>

<pallas_src>
import jax
import jax.numpy as jnp
from jax.experimental import pallas as pl
from jax.experimental.pallas import tpu as pltpu


def _round_up(v, m):
    return ((v + m - 1) // m) * m


def _cdiv(a, b):
    return (a + b - 1) // b


def _softplus(x):
    # Numerically-stable softplus, matches torch.nn.Softplus (beta=1).
    return jnp.maximum(x, 0.0) + jnp.log1p(jnp.exp(-jnp.abs(x)))


def encoder_kernel(x_ref,
                   w1_ref, b1_ref,
                   w11_ref, b11_ref,
                   w2x_ref, b2x_ref,
                   out_ref):
    cd = w1_ref.dtype                      # streaming dtype (bf16)
    x = x_ref[...].astype(cd)              # in-kernel cast (x streamed as f32)

    # fc1 + softplus (bf16 MXU, f32 accumulation, f32 bias/activation).
    h = jnp.dot(x, w1_ref[...], preferred_element_type=jnp.float32) + b1_ref[...]
    h = _softplus(h).astype(cd)

    # fc11 + softplus.
    h = jnp.dot(h, w11_ref[...], preferred_element_type=jnp.float32) + b11_ref[...]
    h = _softplus(h).astype(cd)

    # Fused fc21|fc22 head: one wider matmul. Each half is padded to a
    # multiple of 128 lanes, so both slice stores are lane-aligned and exp is
    # only computed on the z_scale half.
    out = jnp.dot(h, w2x_ref[...], preferred_element_type=jnp.float32) + b2x_ref[...]
    half = out_ref.shape[-1] // 2          # static, multiple of 128
    out_ref[:, :half] = out[:, :half]
    out_ref[:, half:] = jnp.exp(out[:, half:])


def init_params(key, input_dim, hidden_dim, z_dim):
    """Deterministic synthetic parameters (shapes mirror the PyTorch module).

    Weights are stored as (in_features, out_features) == PyTorch weight.T,
    biases as (1, out_features).
    """
    ks = jax.random.split(key, 8)

    def lin(kw, kb, fan_in, fan_out):
        bound = 1.0 / jnp.sqrt(fan_in)
        w = jax.random.uniform(kw, (fan_in, fan_out), jnp.float32, -bound, bound)
        b = jax.random.uniform(kb, (1, fan_out), jnp.float32, -bound, bound)
        return w, b

    w1, b1 = lin(ks[0], ks[1], input_dim, hidden_dim)
    w11, b11 = lin(ks[2], ks[3], hidden_dim, hidden_dim)
    w21, b21 = lin(ks[4], ks[5], hidden_dim, z_dim)
    w22, b22 = lin(ks[6], ks[7], hidden_dim, z_dim)
    return (w1, b1, w11, b11, w21, b21, w22, b22)


def prepare_params(params, compute_dtype=jnp.bfloat16):
    """One-time parameter prep (hoisted out of the per-forward path).

    * fuses fc21 / fc22 column-wise into one head,
    * zero-pads hidden and each head half to multiples of 128 lanes
      (padded hidden activations are softplus(0) but multiply zero weight
       rows, so results are unchanged),
    * casts weights to the streaming dtype (bf16), keeps biases f32.
    """
    w1, b1, w11, b11, w21, b21, w22, b22 = params
    input_dim, hidden_dim = w1.shape
    z_dim = w21.shape[1]
    hp = _round_up(hidden_dim, 128)
    zp = _round_up(z_dim, 128)

    def pad2(a, rows, cols):
        return jnp.pad(a, ((0, rows - a.shape[0]), (0, cols - a.shape[1])))

    w1p = pad2(w1, input_dim, hp).astype(compute_dtype)
    b1p = pad2(b1, 1, hp).astype(jnp.float32)
    w11p = pad2(w11, hp, hp).astype(compute_dtype)
    b11p = pad2(b11, 1, hp).astype(jnp.float32)
    w2xp = jnp.concatenate([pad2(w21, hp, zp), pad2(w22, hp, zp)],
                           axis=1).astype(compute_dtype)
    b2xp = jnp.concatenate([pad2(b21, 1, zp), pad2(b22, 1, zp)],
                           axis=1).astype(jnp.float32)

    meta = {"input_dim": input_dim, "hidden_dim": hidden_dim, "z_dim": z_dim,
            "hp": hp, "zp": zp}
    return (w1p, b1p, w11p, b11p, w2xp, b2xp), meta


def encoder_forward(x, prepped, meta, *, block_rows=1024):
    """Pallas forward pass. Returns (z_loc, z_scale), f32, each (-1, z_dim)."""
    w1p, b1p, w11p, b11p, w2xp, b2xp = prepped
    input_dim = meta["input_dim"]
    z_dim = meta["z_dim"]
    hp = meta["hp"]
    zp = meta["zp"]

    x2d = x.reshape(-1, input_dim)          # native dtype; cast happens in-kernel
    n = x2d.shape[0]

    # Adaptive row tile: bounds pad waste to <8 rows per tile; ensures >=2 grid
    # steps when there is enough work so v7x's two TensorCores both get rows.
    num_tiles = max(1, _cdiv(n, block_rows))
    if num_tiles == 1 and n > 8:
        num_tiles = 2
    tm = _round_up(_cdiv(n, num_tiles), 8)
    n_pad = _round_up(n, tm)
    if n_pad != n:
        x2d = jnp.pad(x2d, ((0, n_pad - n), (0, 0)))
    grid = (n_pad // tm,)

    const = lambda i: (0, 0)                # resident blocks (weights / biases)

    cd_bytes = jnp.dtype(w1p.dtype).itemsize
    x_bytes = jnp.dtype(x2d.dtype).itemsize
    w_elems = input_dim * hp + hp * hp + hp * 2 * zp

    # Explicit scoped-VMEM budget: resident weights/biases (worst case double
    # buffered), pipelined x/out tiles, f32 intermediates; clamped to stay
    # under v7x's 64 MiB physical VMEM at these sizes.
    need = (2 * (w_elems * cd_bytes + (2 * hp + 2 * zp) * 4)
            + 2 * tm * input_dim * x_bytes
            + 2 * tm * 2 * zp * 4
            + 3 * tm * max(hp, 2 * zp) * 4)
    vmem_limit = int(min(max(2 * need, 32 << 20), 100 << 20))

    cost = pl.CostEstimate(
        flops=2 * n_pad * w_elems,
        transcendentals=n_pad * (4 * hp + zp),
        bytes_accessed=(n_pad * input_dim * x_bytes        # x stream in
                        + n_pad * 2 * zp * 4               # output stream out
                        + w_elems * cd_bytes               # weights (once)
                        + (2 * hp + 2 * zp) * 4),          # biases (once)
    )

    def build(weight_pipeline_mode):
        def wspec(shape):
            if weight_pipeline_mode is None:
                return pl.BlockSpec(shape, const)
            return pl.BlockSpec(shape, const, pipeline_mode=weight_pipeline_mode)

        in_specs = [
            pl.BlockSpec((tm, input_dim), lambda i: (i, 0)),   # x: streamed rows
            wspec((input_dim, hp)),
            wspec((1, hp)),
            wspec((hp, hp)),
            wspec((1, hp)),
            wspec((hp, 2 * zp)),
            wspec((1, 2 * zp)),
        ]
        out_spec = pl.BlockSpec((tm, 2 * zp), lambda i: (i, 0))

        return pl.pallas_call(
            encoder_kernel,
            out_shape=jax.ShapeDtypeStruct((n_pad, 2 * zp), jnp.float32),
            grid=grid,
            in_specs=in_specs,
            out_specs=out_spec,
            compiler_params=pltpu.CompilerParams(
                dimension_semantics=("parallel",),
                vmem_limit_bytes=vmem_limit),
            cost_estimate=cost,
        )

    args = (x2d, w1p, b1p, w11p, b11p, w2xp, b2xp)
    try:
        # Constant-index weights/biases never change block -> single-buffer
        # them (halves resident-weight VMEM; matters most on v7x's 64 MiB).
        out = build(pl.Buffered(1))(*args)
    except Exception:
        # Fallback if this jax build does not support BlockSpec.pipeline_mode.
        out = build(None)(*args)

    out = out[:n]
    return out[:, :z_dim], out[:, zp:zp + z_dim]


def ref_forward(x, params, compute_dtype=jnp.bfloat16):
    """Pure-JAX reference mirroring the kernel's precision path."""
    w1, b1, w11, b11, w21, b21, w22, b22 = params
    cd = compute_dtype
    x2d = x.reshape(-1, w1.shape[0]).astype(cd)
    h = _softplus(jnp.dot(x2d, w1.astype(cd),
                          preferred_element_type=jnp.float32) + b1).astype(cd)
    h = _softplus(jnp.dot(h, w11.astype(cd),
                          preferred_element_type=jnp.float32) + b11).astype(cd)
    z_loc = jnp.dot(h, w21.astype(cd), preferred_element_type=jnp.float32) + b21
    z_scale = jnp.exp(jnp.dot(h, w22.astype(cd),
                              preferred_element_type=jnp.float32) + b22)
    return z_loc, z_scale


if __name__ == "__main__":
    input_dim, hidden_dim, z_dim = 32, 64, 16

    key = jax.random.PRNGKey(0)
    k_x, k_p = jax.random.split(key)

    # Example input: (batch=4, assets=8, features=32) -> flattened (32, 32).
    x = jax.random.normal(k_x, (4, 8, input_dim), dtype=jnp.float32)
    params = init_params(k_p, input_dim, hidden_dim, z_dim)
    prepped, meta = prepare_params(params)   # one-time prep (hoisted out of fwd)

    z_loc, z_scale = encoder_forward(x, prepped, meta)
    jax.block_until_ready((z_loc, z_scale))

    ref_loc, ref_scale = ref_forward(x, params)
    assert z_loc.shape == (32, z_dim) and z_scale.shape == (32, z_dim)
    assert jnp.allclose(z_loc, ref_loc, atol=2e-3, rtol=2e-3)
    assert jnp.allclose(z_scale, ref_scale, atol=2e-3, rtol=2e-3)

    print("KERNEL_OK")
</pallas_src>

<mosaic_0001>
module attributes {stable_mosaic.version = 11 : i64} {
  func.func @encoder_kernel(%arg0: i32, %arg1: memref<16x32xf32, #tpu.memory_space<vmem>>, %arg2: memref<32x128xbf16, #tpu.memory_space<vmem>>, %arg3: memref<1x128xf32, #tpu.memory_space<vmem>>, %arg4: memref<128x128xbf16, #tpu.memory_space<vmem>>, %arg5: memref<1x128xf32, #tpu.memory_space<vmem>>, %arg6: memref<128x256xbf16, #tpu.memory_space<vmem>>, %arg7: memref<1x256xf32, #tpu.memory_space<vmem>>, %arg8: memref<16x256xf32, #tpu.memory_space<vmem>>) attributes {dimension_semantics = [#tpu.dimension_semantics<parallel>], iteration_bounds = array<i64: 2>, scalar_prefetch = 0 : i64, scratch_operands = 0 : i64, tpu.core_type = #tpu.core_type<tc>, window_params = [{transform_indices = @transform_0, window_bounds = array<i64: 16, 32>}, {pipeline_mode = #tpu.pipeline_mode<synchronous>, transform_indices = @transform_1, window_bounds = array<i64: 32, 128>}, {pipeline_mode = #tpu.pipeline_mode<synchronous>, transform_indices = @transform_2, window_bounds = array<i64: 1, 128>}, {pipeline_mode = #tpu.pipeline_mode<synchronous>, transform_indices = @transform_3, window_bounds = array<i64: 128, 128>}, {pipeline_mode = #tpu.pipeline_mode<synchronous>, transform_indices = @transform_4, window_bounds = array<i64: 1, 128>}, {pipeline_mode = #tpu.pipeline_mode<synchronous>, transform_indices = @transform_5, window_bounds = array<i64: 128, 256>}, {pipeline_mode = #tpu.pipeline_mode<synchronous>, transform_indices = @transform_6, window_bounds = array<i64: 1, 256>}, {transform_indices = @transform_7, window_bounds = array<i64: 16, 256>}]} {
    %c0 = arith.constant 0 : index
    %c0_0 = arith.constant 0 : index
    %0 = vector.load %arg1[%c0, %c0_0] : memref<16x32xf32, #tpu.memory_space<vmem>>, vector<16x32xf32>
    %1 = arith.truncf %0 : vector<16x32xf32> to vector<16x32xbf16>
    %c0_1 = arith.constant 0 : index
    %c0_2 = arith.constant 0 : index
    %2 = vector.load %arg2[%c0_1, %c0_2] : memref<32x128xbf16, #tpu.memory_space<vmem>>, vector<32x128xbf16>
    %cst = arith.constant dense<0.000000e+00> : vector<16x128xf32>
    %3 = tpu.matmul %1, %2, %cst {dimension_numbers = #tpu.dot_dimension_numbers<[1], [0], [0], [1], [0, 0, 1, 1], [], []>} : vector<16x32xbf16>, vector<32x128xbf16>, vector<16x128xf32> -> vector<16x128xf32>
    %c0_3 = arith.constant 0 : index
    %c0_4 = arith.constant 0 : index
    %4 = vector.load %arg3[%c0_3, %c0_4] : memref<1x128xf32, #tpu.memory_space<vmem>>, vector<1x128xf32>
    %5 = vector.broadcast %4 : vector<1x128xf32> to vector<16x128xf32>
    %6 = arith.addf %3, %5 : vector<16x128xf32>
    %cst_5 = arith.constant 0.000000e+00 : f32
    %7 = vector.broadcast %cst_5 : f32 to vector<16x128xf32>
    %8 = arith.maximumf %6, %7 : vector<16x128xf32>
    %9 = math.absf %6 : vector<16x128xf32>
    %cst_6 = arith.constant 0.000000e+00 : f32
    %10 = vector.broadcast %cst_6 : f32 to vector<16x128xf32>
    %11 = arith.subf %10, %9 : vector<16x128xf32>
    %12 = math.exp %11 : vector<16x128xf32>
    %13 = math.log1p %12 : vector<16x128xf32>
    %14 = arith.addf %8, %13 : vector<16x128xf32>
    %15 = arith.truncf %14 : vector<16x128xf32> to vector<16x128xbf16>
    %c0_7 = arith.constant 0 : index
    %c0_8 = arith.constant 0 : index
    %16 = vector.load %arg4[%c0_7, %c0_8] : memref<128x128xbf16, #tpu.memory_space<vmem>>, vector<128x128xbf16>
    %cst_9 = arith.constant dense<0.000000e+00> : vector<16x128xf32>
    %17 = tpu.matmul %15, %16, %cst_9 {dimension_numbers = #tpu.dot_dimension_numbers<[1], [0], [0], [1], [0, 0, 1, 1], [], []>} : vector<16x128xbf16>, vector<128x128xbf16>, vector<16x128xf32> -> vector<16x128xf32>
    %c0_10 = arith.constant 0 : index
    %c0_11 = arith.constant 0 : index
    %18 = vector.load %arg5[%c0_10, %c0_11] : memref<1x128xf32, #tpu.memory_space<vmem>>, vector<1x128xf32>
    %19 = vector.broadcast %18 : vector<1x128xf32> to vector<16x128xf32>
    %20 = arith.addf %17, %19 : vector<16x128xf32>
    %cst_12 = arith.constant 0.000000e+00 : f32
    %21 = vector.broadcast %cst_12 : f32 to vector<16x128xf32>
    %22 = arith.maximumf %20, %21 : vector<16x128xf32>
    %23 = math.absf %20 : vector<16x128xf32>
    %cst_13 = arith.constant 0.000000e+00 : f32
    %24 = vector.broadcast %cst_13 : f32 to vector<16x128xf32>
    %25 = arith.subf %24, %23 : vector<16x128xf32>
    %26 = math.exp %25 : vector<16x128xf32>
    %27 = math.log1p %26 : vector<16x128xf32>
    %28 = arith.addf %22, %27 : vector<16x128xf32>
    %29 = arith.truncf %28 : vector<16x128xf32> to vector<16x128xbf16>
    %c0_14 = arith.constant 0 : index
    %c0_15 = arith.constant 0 : index
    %30 = vector.load %arg6[%c0_14, %c0_15] : memref<128x256xbf16, #tpu.memory_space<vmem>>, vector<128x256xbf16>
    %cst_16 = arith.constant dense<0.000000e+00> : vector<16x256xf32>
    %31 = tpu.matmul %29, %30, %cst_16 {dimension_numbers = #tpu.dot_dimension_numbers<[1], [0], [0], [1], [0, 0, 1, 1], [], []>} : vector<16x128xbf16>, vector<128x256xbf16>, vector<16x256xf32> -> vector<16x256xf32>
    %c0_17 = arith.constant 0 : index
    %c0_18 = arith.constant 0 : index
    %32 = vector.load %arg7[%c0_17, %c0_18] : memref<1x256xf32, #tpu.memory_space<vmem>>, vector<1x256xf32>
    %33 = vector.broadcast %32 : vector<1x256xf32> to vector<16x256xf32>
    %34 = arith.addf %31, %33 : vector<16x256xf32>
    %35 = vector.extract_strided_slice %34 {offsets = [0, 0], sizes = [16, 128], strides = [1, 1]} : vector<16x256xf32> to vector<16x128xf32>
    %c0_19 = arith.constant 0 : index
    %c0_20 = arith.constant 0 : index
    %36 = vector.load %arg8[%c0_19, %c0_20] : memref<16x256xf32, #tpu.memory_space<vmem>>, vector<16x128xf32>
    tpu.vector_store %arg8[%c0_19, %c0_20], %35 {strides = array<i32>} : memref<16x256xf32, #tpu.memory_space<vmem>>, vector<16x128xf32>,
    %37 = vector.extract_strided_slice %34 {offsets = [0, 128], sizes = [16, 128], strides = [1, 1]} : vector<16x256xf32> to vector<16x128xf32>
    %38 = math.exp %37 : vector<16x128xf32>
    %c0_21 = arith.constant 0 : index
    %c128 = arith.constant 128 : index
    %39 = vector.load %arg8[%c0_21, %c128] : memref<16x256xf32, #tpu.memory_space<vmem>>, vector<16x128xf32>
    tpu.vector_store %arg8[%c0_21, %c128], %38 {strides = array<i32>} : memref<16x256xf32, #tpu.memory_space<vmem>>, vector<16x128xf32>,
    return
  }
  func.func @transform_0(%arg0: i32) -> (i32, i32) {
    %c0_i32 = arith.constant 0 : i32
    %c0_i32_0 = arith.constant 0 : i32
    return %arg0, %c0_i32 : i32, i32
  }
  func.func @transform_1(%arg0: i32) -> (i32, i32) {
    %c0_i32 = arith.constant 0 : i32
    %c0_i32_0 = arith.constant 0 : i32
    %c0_i32_1 = arith.constant 0 : i32
    return %c0_i32, %c0_i32_0 : i32, i32
  }
  func.func @transform_2(%arg0: i32) -> (i32, i32) {
    %c0_i32 = arith.constant 0 : i32
    %c0_i32_0 = arith.constant 0 : i32
    %c0_i32_1 = arith.constant 0 : i32
    return %c0_i32, %c0_i32_0 : i32, i32
  }
  func.func @transform_3(%arg0: i32) -> (i32, i32) {
    %c0_i32 = arith.constant 0 : i32
    %c0_i32_0 = arith.constant 0 : i32
    %c0_i32_1 = arith.constant 0 : i32
    return %c0_i32, %c0_i32_0 : i32, i32
  }
  func.func @transform_4(%arg0: i32) -> (i32, i32) {
    %c0_i32 = arith.constant 0 : i32
    %c0_i32_0 = arith.constant 0 : i32
    %c0_i32_1 = arith.constant 0 : i32
    return %c0_i32, %c0_i32_0 : i32, i32
  }
  func.func @transform_5(%arg0: i32) -> (i32, i32) {
    %c0_i32 = arith.constant 0 : i32
    %c0_i32_0 = arith.constant 0 : i32
    %c0_i32_1 = arith.constant 0 : i32
    return %c0_i32, %c0_i32_0 : i32, i32
  }
  func.func @transform_6(%arg0: i32) -> (i32, i32) {
    %c0_i32 = arith.constant 0 : i32
    %c0_i32_0 = arith.constant 0 : i32
    %c0_i32_1 = arith.constant 0 : i32
    return %c0_i32, %c0_i32_0 : i32, i32
  }
  func.func @transform_7(%arg0: i32) -> (i32, i32) {
    %c0_i32 = arith.constant 0 : i32
    %c0_i32_0 = arith.constant 0 : i32
    return %arg0, %c0_i32 : i32, i32
  }
}

module attributes {stable_mosaic.version = 11 : i64} {
  func.func @encoder_kernel(%arg0: i32, %arg1: memref<16x32xf32, #tpu.memory_space<vmem>>, %arg2: memref<32x128xbf16, #tpu.memory_space<vmem>>, %arg3: memref<1x128xf32, #tpu.memory_space<vmem>>, %arg4: memref<128x128xbf16, #tpu.memory_space<vmem>>, %arg5: memref<1x128xf32, #tpu.memory_space<vmem>>, %arg6: memref<128x256xbf16, #tpu.memory_space<vmem>>, %arg7: memref<1x256xf32, #tpu.memory_space<vmem>>, %arg8: memref<16x256xf32, #tpu.memory_space<vmem>>) attributes {dimension_semantics = [#tpu.dimension_semantics<parallel>], iteration_bounds = array<i64: 2>, scalar_prefetch = 0 : i64, scratch_operands = 0 : i64, tpu.core_type = #tpu.core_type<tc>, window_params = [{transform_indices = @transform_0, window_bounds = array<i64: 16, 32>}, {pipeline_mode = #tpu.pipeline_mode<synchronous>, transform_indices = @transform_1, window_bounds = array<i64: 32, 128>}, {pipeline_mode = #tpu.pipeline_mode<synchronous>, transform_indices = @transform_2, window_bounds = array<i64: 1, 128>}, {pipeline_mode = #tpu.pipeline_mode<synchronous>, transform_indices = @transform_3, window_bounds = array<i64: 128, 128>}, {pipeline_mode = #tpu.pipeline_mode<synchronous>, transform_indices = @transform_4, window_bounds = array<i64: 1, 128>}, {pipeline_mode = #tpu.pipeline_mode<synchronous>, transform_indices = @transform_5, window_bounds = array<i64: 128, 256>}, {pipeline_mode = #tpu.pipeline_mode<synchronous>, transform_indices = @transform_6, window_bounds = array<i64: 1, 256>}, {transform_indices = @transform_7, window_bounds = array<i64: 16, 256>}]} {
    %c0 = arith.constant 0 : index
    %c0_0 = arith.constant 0 : index
    %0 = vector.load %arg1[%c0, %c0_0] : memref<16x32xf32, #tpu.memory_space<vmem>>, vector<16x32xf32>
    %1 = arith.truncf %0 : vector<16x32xf32> to vector<16x32xbf16>
    %c0_1 = arith.constant 0 : index
    %c0_2 = arith.constant 0 : index
    %2 = vector.load %arg2[%c0_1, %c0_2] : memref<32x128xbf16, #tpu.memory_space<vmem>>, vector<32x128xbf16>
    %cst = arith.constant dense<0.000000e+00> : vector<16x128xf32>
    %3 = tpu.matmul %1, %2, %cst {dimension_numbers = #tpu.dot_dimension_numbers<[1], [0], [0], [1], [0, 0, 1, 1], [], []>} : vector<16x32xbf16>, vector<32x128xbf16>, vector<16x128xf32> -> vector<16x128xf32>
    %c0_3 = arith.constant 0 : index
    %c0_4 = arith.constant 0 : index
    %4 = vector.load %arg3[%c0_3, %c0_4] : memref<1x128xf32, #tpu.memory_space<vmem>>, vector<1x128xf32>
    %5 = vector.broadcast %4 : vector<1x128xf32> to vector<16x128xf32>
    %6 = arith.addf %3, %5 : vector<16x128xf32>
    %cst_5 = arith.constant 0.000000e+00 : f32
    %7 = vector.broadcast %cst_5 : f32 to vector<16x128xf32>
    %8 = arith.maximumf %6, %7 : vector<16x128xf32>
    %9 = math.absf %6 : vector<16x128xf32>
    %cst_6 = arith.constant 0.000000e+00 : f32
    %10 = vector.broadcast %cst_6 : f32 to vector<16x128xf32>
    %11 = arith.subf %10, %9 : vector<16x128xf32>
    %12 = math.exp %11 : vector<16x128xf32>
    %13 = math.log1p %12 : vector<16x128xf32>
    %14 = arith.addf %8, %13 : vector<16x128xf32>
    %15 = arith.truncf %14 : vector<16x128xf32> to vector<16x128xbf16>
    %c0_7 = arith.constant 0 : index
    %c0_8 = arith.constant 0 : index
    %16 = vector.load %arg4[%c0_7, %c0_8] : memref<128x128xbf16, #tpu.memory_space<vmem>>, vector<128x128xbf16>
    %cst_9 = arith.constant dense<0.000000e+00> : vector<16x128xf32>
    %17 = tpu.matmul %15, %16, %cst_9 {dimension_numbers = #tpu.dot_dimension_numbers<[1], [0], [0], [1], [0, 0, 1, 1], [], []>} : vector<16x128xbf16>, vector<128x128xbf16>, vector<16x128xf32> -> vector<16x128xf32>
    %c0_10 = arith.constant 0 : index
    %c0_11 = arith.constant 0 : index
    %18 = vector.load %arg5[%c0_10, %c0_11] : memref<1x128xf32, #tpu.memory_space<vmem>>, vector<1x128xf32>
    %19 = vector.broadcast %18 : vector<1x128xf32> to vector<16x128xf32>
    %20 = arith.addf %17, %19 : vector<16x128xf32>
    %cst_12 = arith.constant 0.000000e+00 : f32
    %21 = vector.broadcast %cst_12 : f32 to vector<16x128xf32>
    %22 = arith.maximumf %20, %21 : vector<16x128xf32>
    %23 = math.absf %20 : vector<16x128xf32>
    %cst_13 = arith.constant 0.000000e+00 : f32
    %24 = vector.broadcast %cst_13 : f32 to vector<16x128xf32>
    %25 = arith.subf %24, %23 : vector<16x128xf32>
    %26 = math.exp %25 : vector<16x128xf32>
    %27 = math.log1p %26 : vector<16x128xf32>
    %28 = arith.addf %22, %27 : vector<16x128xf32>
    %29 = arith.truncf %28 : vector<16x128xf32> to vector<16x128xbf16>
    %c0_14 = arith.constant 0 : index
    %c0_15 = arith.constant 0 : index
    %30 = vector.load %arg6[%c0_14, %c0_15] : memref<128x256xbf16, #tpu.memory_space<vmem>>, vector<128x256xbf16>
    %cst_16 = arith.constant dense<0.000000e+00> : vector<16x256xf32>
    %31 = tpu.matmul %29, %30, %cst_16 {dimension_numbers = #tpu.dot_dimension_numbers<[1], [0], [0], [1], [0, 0, 1, 1], [], []>} : vector<16x128xbf16>, vector<128x256xbf16>, vector<16x256xf32> -> vector<16x256xf32>
    %c0_17 = arith.constant 0 : index
    %c0_18 = arith.constant 0 : index
    %32 = vector.load %arg7[%c0_17, %c0_18] : memref<1x256xf32, #tpu.memory_space<vmem>>, vector<1x256xf32>
    %33 = vector.broadcast %32 : vector<1x256xf32> to vector<16x256xf32>
    %34 = arith.addf %31, %33 : vector<16x256xf32>
    %35 = vector.extract_strided_slice %34 {offsets = [0, 0], sizes = [16, 128], strides = [1, 1]} : vector<16x256xf32> to vector<16x128xf32>
    %c0_19 = arith.constant 0 : index
    %c0_20 = arith.constant 0 : index
    %36 = vector.load %arg8[%c0_19, %c0_20] : memref<16x256xf32, #tpu.memory_space<vmem>>, vector<16x128xf32>
    tpu.vector_store %arg8[%c0_19, %c0_20], %35 {strides = array<i32>} : memref<16x256xf32, #tpu.memory_space<vmem>>, vector<16x128xf32>,
    %37 = vector.extract_strided_slice %34 {offsets = [0, 128], sizes = [16, 128], strides = [1, 1]} : vector<16x256xf32> to vector<16x128xf32>
    %38 = math.exp %37 : vector<16x128xf32>
    %c0_21 = arith.constant 0 : index
    %c128 = arith.constant 128 : index
    %39 = vector.load %arg8[%c0_21, %c128] : memref<16x256xf32, #tpu.memory_space<vmem>>, vector<16x128xf32>
    tpu.vector_store %arg8[%c0_21, %c128], %38 {strides = array<i32>} : memref<16x256xf32, #tpu.memory_space<vmem>>, vector<16x128xf32>,
    return
  }
  func.func @transform_0(%arg0: i32) -> (i32, i32) {
    %c0_i32 = arith.constant 0 : i32
    %c0_i32_0 = arith.constant 0 : i32
    return %arg0, %c0_i32 : i32, i32
  }
  func.func @transform_1(%arg0: i32) -> (i32, i32) {
    %c0_i32 = arith.constant 0 : i32
    %c0_i32_0 = arith.constant 0 : i32
    %c0_i32_1 = arith.constant 0 : i32
    return %c0_i32, %c0_i32_0 : i32, i32
  }
  func.func @transform_2(%arg0: i32) -> (i32, i32) {
    %c0_i32 = arith.constant 0 : i32
    %c0_i32_0 = arith.constant 0 : i32
    %c0_i32_1 = arith.constant 0 : i32
    return %c0_i32, %c0_i32_0 : i32, i32
  }
  func.func @transform_3(%arg0: i32) -> (i32, i32) {
    %c0_i32 = arith.constant 0 : i32
    %c0_i32_0 = arith.constant 0 : i32
    %c0_i32_1 = arith.constant 0 : i32
    return %c0_i32, %c0_i32_0 : i32, i32
  }
  func.func @transform_4(%arg0: i32) -> (i32, i32) {
    %c0_i32 = arith.constant 0 : i32
    %c0_i32_0 = arith.constant 0 : i32
    %c0_i32_1 = arith.constant 0 : i32
    return %c0_i32, %c0_i32_0 : i32, i32
  }
  func.func @transform_5(%arg0: i32) -> (i32, i32) {
    %c0_i32 = arith.constant 0 : i32
    %c0_i32_0 = arith.constant 0 : i32
    %c0_i32_1 = arith.constant 0 : i32
    return %c0_i32, %c0_i32_0 : i32, i32
  }
  func.func @transform_6(%arg0: i32) -> (i32, i32) {
    %c0_i32 = arith.constant 0 : i32
    %c0_i32_0 = arith.constant 0 : i32
    %c0_i32_1 = arith.constant 0 : i32
    return %c0_i32, %c0_i32_0 : i32, i32
  }
  func.func @transform_7(%arg0: i32) -> (i32, i32) {
    %c0_i32 = arith.constant 0 : i32
    %c0_i32_0 = arith.constant 0 : i32
    return %arg0, %c0_i32 : i32, i32
  }
}

</mosaic_0001>

<llo_original>
// kernel: tpu_custom_call.1
$region0: #{tpu_custom_call.1}
  #allocation0 [shape = 'u32[]', space=smem, size = 0x4, offset = 0x4, fixed_abs, tag = 'smem constant byte address 0x4 - core index']
  #allocation1 [shape = 'u32[144,128]{1,0:T(1,128)}', space=vmem, size = 0x12000, scoped, tag = 'internal scratch']
  %s0 = inlined_call_operand.hbm [shape: f32[32,32], index: 0, kind: input, shape index: {}]
  %s1 = inlined_call_operand.hbm [shape: bf16[32,128], index: 1, kind: input, shape index: {}]
  %s2 = inlined_call_operand.vmem [shape: f32[1,128], index: 2, kind: input, shape index: {}]
  %s3 = inlined_call_operand.hbm [shape: bf16[128,128], index: 3, kind: input, shape index: {}]
  %s4 = inlined_call_operand.vmem [shape: f32[1,128], index: 4, kind: input, shape index: {}]
  %s5 = inlined_call_operand.hbm [shape: bf16[128,256], index: 5, kind: input, shape index: {}]
  %s6 = inlined_call_operand.vmem [shape: f32[1,256], index: 6, kind: input, shape index: {}]
  %s7 = inlined_call_operand.hbm [shape: f32[32,256], index: 7, kind: output, shape index: {}]
  %s8 = sld [smem:[#allocation0]]
  $region77: #{tpu_custom_call.1} parent=0
    _
  %s10 = ssub.s32 1, %s8
  %s11 = scalar_select 0, %s10, %s8
  $region1: #{tpu_custom_call.1} parent=0
    #allocation2 [shape = 'u8[16384]{0}', space=vmem, size = 0x4000, scoped, tag = 'input window, operand 0']
    #allocation3 [shape = 's32[2]{0}', space=sflag, size = 0x8, scoped, tag = 'scoped memory for tpu_custom_call.1']
    #allocation4 [shape = 's32[2]{0}', space=sflag, size = 0x8, scoped, tag = 'scoped memory for tpu_custom_call.1']
    #allocation5 [shape = 'u8[8192]{0}', space=vmem, size = 0x2000, scoped, tag = 'input window, operand 1, single buffered']
    #allocation6 [shape = 's32[1]{0}', space=sflag, size = 0x4, scoped, tag = 'scoped memory for tpu_custom_call.1']
    #allocation7 [shape = 'u8[32768]{0}', space=vmem, size = 0x8000, scoped, tag = 'input window, operand 3, single buffered']
    #allocation8 [shape = 'u8[65536]{0}', space=vmem, size = 0x10000, scoped, tag = 'input window, operand 5, single buffered']
    #allocation9 [shape = 's32[1]{0}', space=sflag, size = 0x4, scoped, tag = 'scoped memory for tpu_custom_call.1']
    #allocation10 [shape = 'u8[32768]{0}', space=vmem, size = 0x8000, scoped, tag = 'output window, operand 0']
    %12 = vsyncpa [#allocation3], 0
    %s13 = scalar_lea.sflag [#allocation3], 1
    %14 = vsyncpa %s13, 0
    %15 = vsyncpa [#allocation6], 0
    %16 = vsyncpa [#allocation9], 0
    %17 = vsyncpa [#allocation4], 0
    %s18 = scalar_lea.sflag [#allocation4], 1
    %19 = vsyncpa %s18, 0
    loop: start=0, step=1, limit=4
    $region2: #{tpu_custom_call.1} parent=1 // loop_pre_header
      _
    $region3: #{tpu_custom_call.1} parent=1 // loop_header
      %s21 = sphi 0, %s25
      %p22 = scmp.ge.s32.totalorder %s21, 4
      %s31 = sphi 0, %s33
      %s34 = sphi 0, %s31
      %s35 = sphi 0, %s34
      %s51 = sphi 0, %s35
      %s55 = sphi 0, %s55
      %s57 = sphi 0, %s55
      %s58 = sphi 0, %s57
      %s72 = sphi 0, %s58
      %s76 = sphi 0, %s76
      %s78 = sphi 0, %s76
      %s79 = sphi 0, %s78
      %s93 = sphi 0, %s79
      %s97 = sphi 0, %s97
      %s99 = sphi 0, %s97
      %s100 = sphi 0, %s99
      %s114 = sphi 0, %s100
      %s118 = sphi 0, %s118
      %s120 = sphi 0, %s118
      %s121 = sphi 0, %s120
      %s135 = sphi 0, %s121
      %s139 = sphi 0, %s139
      %s141 = sphi 0, %s139
      %s142 = sphi 0, %s141
      %s156 = sphi 0, %s142
      %s160 = sphi 0, %s160
      %s162 = sphi 0, %s160
      %s163 = sphi 0, %s162
      %s177 = sphi 0, %s163
      %s183 = sphi 0, %s185
      %s186 = sphi 0, %s183
      %s187 = sphi 0, %s186
      %s203 = sphi 0, %s187
    $region4: #{tpu_custom_call.1} parent=1 // loop_header_branch
      %24 = sbr.rel (%p22) target = $region8
    $region5: #{tpu_custom_call.1} parent=1 // loop_body
      %s26 = ssub.s32 %s21, 1
      %s27 = ssub.s32 %s21, 2
      %s28 = sadd.s32 %s21, 1
      %s29 = ssub.s32 %s21, %s28
      %p30 = scmp.eq.s32.totalorder %s29, 0
      %s32 = sadd.s32 %s31, 1
      %s33 = scalar_select %p30, %s31, %s32
      %p36 = pneg %p30
      %p37 = scmp.eq.s32.totalorder %s21, 1
      %p38 = por %p36, %p37
      %p39 = scmp.ne.s32.totalorder %s31, %s34
      %p40 = scmp.eq.s32.totalorder %s21, 0
      %p41 = por %p39, %p40
      %p42 = scmp.ne.s32.totalorder %s31, %s34
      %p43 = scmp.eq.s32.totalorder %s26, 1
      %p44 = por %p42, %p43
      %p45 = scmp.ne.s32.totalorder %s34, %s35
      %p46 = scmp.eq.s32.totalorder %s26, 0
      %p47 = por %p45, %p46
      %p48 = scmp.ne.s32.totalorder %s34, %s35
      %p49 = scmp.eq.s32.totalorder %s27, 1
      %p50 = por %p48, %p49
      %p52 = scmp.ne.s32.totalorder %s35, %s51
      %p53 = scmp.eq.s32.totalorder %s27, 0
      %p54 = por %p52, %p53
      %s56 = sadd.s32 %s55, 1
      %p59 = scmp.eq.s32.totalorder %s21, 1
      %p60 = scmp.ne.s32.totalorder %s55, %s57
      %p61 = scmp.eq.s32.totalorder %s21, 0
      %p62 = por %p60, %p61
      %p63 = scmp.ne.s32.totalorder %s55, %s57
      %p64 = scmp.eq.s32.totalorder %s26, 1
      %p65 = por %p63, %p64
      %p66 = scmp.ne.s32.totalorder %s57, %s58
      %p67 = scmp.eq.s32.totalorder %s26, 0
      %p68 = por %p66, %p67
      %p69 = scmp.ne.s32.totalorder %s57, %s58
      %p70 = scmp.eq.s32.totalorder %s27, 1
      %p71 = por %p69, %p70
      %p73 = scmp.ne.s32.totalorder %s58, %s72
      %p74 = scmp.eq.s32.totalorder %s27, 0
      %p75 = por %p73, %p74
      %s77 = sadd.s32 %s76, 1
      %p80 = scmp.eq.s32.totalorder %s21, 1
      %p81 = scmp.ne.s32.totalorder %s76, %s78
      %p82 = scmp.eq.s32.totalorder %s21, 0
      %p83 = por %p81, %p82
      %p84 = scmp.ne.s32.totalorder %s76, %s78
      %p85 = scmp.eq.s32.totalorder %s26, 1
      %p86 = por %p84, %p85
      %p87 = scmp.ne.s32.totalorder %s78, %s79
      %p88 = scmp.eq.s32.totalorder %s26, 0
      %p89 = por %p87, %p88
      %p90 = scmp.ne.s32.totalorder %s78, %s79
      %p91 = scmp.eq.s32.totalorder %s27, 1
      %p92 = por %p90, %p91
      %p94 = scmp.ne.s32.totalorder %s79, %s93
      %p95 = scmp.eq.s32.totalorder %s27, 0
      %p96 = por %p94, %p95
      %s98 = sadd.s32 %s97, 1
      %p101 = scmp.eq.s32.totalorder %s21, 1
      %p102 = scmp.ne.s32.totalorder %s97, %s99
      %p103 = scmp.eq.s32.totalorder %s21, 0
      %p104 = por %p102, %p103
      %p105 = scmp.ne.s32.totalorder %s97, %s99
      %p106 = scmp.eq.s32.totalorder %s26, 1
      %p107 = por %p105, %p106
      %p108 = scmp.ne.s32.totalorder %s99, %s100
      %p109 = scmp.eq.s32.totalorder %s26, 0
      %p110 = por %p108, %p109
      %p111 = scmp.ne.s32.totalorder %s99, %s100
      %p112 = scmp.eq.s32.totalorder %s27, 1
      %p113 = por %p111, %p112
      %p115 = scmp.ne.s32.totalorder %s100, %s114
      %p116 = scmp.eq.s32.totalorder %s27, 0
      %p117 = por %p115, %p116
      %s119 = sadd.s32 %s118, 1
      %p122 = scmp.eq.s32.totalorder %s21, 1
      %p123 = scmp.ne.s32.totalorder %s118, %s120
      %p124 = scmp.eq.s32.totalorder %s21, 0
      %p125 = por %p123, %p124
      %p126 = scmp.ne.s32.totalorder %s118, %s120
      %p127 = scmp.eq.s32.totalorder %s26, 1
      %p128 = por %p126, %p127
      %p129 = scmp.ne.s32.totalorder %s120, %s121
      %p130 = scmp.eq.s32.totalorder %s26, 0
      %p131 = por %p129, %p130
      %p132 = scmp.ne.s32.totalorder %s120, %s121
      %p133 = scmp.eq.s32.totalorder %s27, 1
      %p134 = por %p132, %p133
      %p136 = scmp.ne.s32.totalorder %s121, %s135
      %p137 = scmp.eq.s32.totalorder %s27, 0
      %p138 = por %p136, %p137
      %s140 = sadd.s32 %s139, 1
      %p143 = scmp.eq.s32.totalorder %s21, 1
      %p144 = scmp.ne.s32.totalorder %s139, %s141
      %p145 = scmp.eq.s32.totalorder %s21, 0
      %p146 = por %p144, %p145
      %p147 = scmp.ne.s32.totalorder %s139, %s141
      %p148 = scmp.eq.s32.totalorder %s26, 1
      %p149 = por %p147, %p148
      %p150 = scmp.ne.s32.totalorder %s141, %s142
      %p151 = scmp.eq.s32.totalorder %s26, 0
      %p152 = por %p150, %p151
      %p153 = scmp.ne.s32.totalorder %s141, %s142
      %p154 = scmp.eq.s32.totalorder %s27, 1
      %p155 = por %p153, %p154
      %p157 = scmp.ne.s32.totalorder %s142, %s156
      %p158 = scmp.eq.s32.totalorder %s27, 0
      %p159 = por %p157, %p158
      %s161 = sadd.s32 %s160, 1
      %p164 = scmp.eq.s32.totalorder %s21, 1
      %p165 = scmp.ne.s32.totalorder %s160, %s162
      %p166 = scmp.eq.s32.totalorder %s21, 0
      %p167 = por %p165, %p166
      %p168 = scmp.ne.s32.totalorder %s160, %s162
      %p169 = scmp.eq.s32.totalorder %s26, 1
      %p170 = por %p168, %p169
      %p171 = scmp.ne.s32.totalorder %s162, %s163
      %p172 = scmp.eq.s32.totalorder %s26, 0
      %p173 = por %p171, %p172
      %p174 = scmp.ne.s32.totalorder %s162, %s163
      %p175 = scmp.eq.s32.totalorder %s27, 1
      %p176 = por %p174, %p175
      %p178 = scmp.ne.s32.totalorder %s163, %s177
      %p179 = scmp.eq.s32.totalorder %s27, 0
      %p180 = por %p178, %p179
      %s181 = ssub.s32 %s21, %s28
      %p182 = scmp.eq.s32.totalorder %s181, 0
      %s184 = sadd.s32 %s183, 1
      %s185 = scalar_select %p182, %s183, %s184
      %p188 = pneg %p182
      %p189 = scmp.eq.s32.totalorder %s21, 1
      %p190 = por %p188, %p189
      %p191 = scmp.ne.s32.totalorder %s183, %s186
      %p192 = scmp.eq.s32.totalorder %s21, 0
      %p193 = por %p191, %p192
      %p194 = scmp.ne.s32.totalorder %s183, %s186
      %p195 = scmp.eq.s32.totalorder %s26, 1
      %p196 = por %p194, %p195
      %p197 = scmp.ne.s32.totalorder %s186, %s187
      %p198 = scmp.eq.s32.totalorder %s26, 0
      %p199 = por %p197, %p198
      %p200 = scmp.ne.s32.totalorder %s186, %s187
      %p201 = scmp.eq.s32.totalorder %s27, 1
      %p202 = por %p200, %p201
      %p204 = scmp.ne.s32.totalorder %s187, %s203
      %p205 = scmp.eq.s32.totalorder %s27, 0
      %p206 = por %p204, %p205
      %p207 = scmp.le.s32.totalorder 1, %s21
      %p208 = scmp.lt.s32.totalorder %s21, 3
      %p209 = pnand %p207, %p208
      %p210 = pneg %p209
      // Predicated region
      $region9: #{tpu_custom_call.1} parent=5 // pred_check
        _
      $region10: #{tpu_custom_call.1} parent=5 // pred_check_branch
        %212 = sbr.rel (%p209) target = $region12
      $region11: #{tpu_custom_call.1} parent=5 // pred_region
        %s213 = ssub.s32 %s21, 1
        // Predicated region
        $region13: #{tpu_custom_call.1} parent=11 // pred_check
          %p214 = pneg %p68
        $region14: #{tpu_custom_call.1} parent=11 // pred_check_branch
          %216 = sbr.rel (%p214) target = $region16
        $region15: #{tpu_custom_call.1} parent=11 // pred_region
          %s218 = ssub.s32 256, 256
          %219 = vsyncadd [#allocation6], %s218
          %s220 = sshll.u32 [#allocation5], 4
          %s221 = int_to_ptr.vmem [resolvable:$true] %s220
          %226 = dma.hbm_to_vmem [thread:$0]  %s1, 256, %s221, [#allocation6], 64, 64, 4
        $region16: #{tpu_custom_call.1} parent=11 // pred_fallthru
          _
        // Predicated region
        $region17: #{tpu_custom_call.1} parent=11 // pred_check
          %p227 = pneg %p89
        $region18: #{tpu_custom_call.1} parent=11 // pred_check_branch
          %229 = sbr.rel (%p227) target = $region20
        $region19: #{tpu_custom_call.1} parent=11 // pred_region
          _
        $region20: #{tpu_custom_call.1} parent=11 // pred_fallthru
          _
        // Predicated region
        $region21: #{tpu_custom_call.1} parent=11 // pred_check
          %p230 = pneg %p110
        $region22: #{tpu_custom_call.1} parent=11 // pred_check_branch
          %232 = sbr.rel (%p230) target = $region24
        $region23: #{tpu_custom_call.1} parent=11 // pred_region
          %s234 = ssub.s32 1024, 1024
          %235 = vsyncadd [#allocation6], %s234
          %s236 = sshll.u32 [#allocation7], 4
          %s237 = int_to_ptr.vmem [resolvable:$true] %s236
          %242 = dma.hbm_to_vmem [thread:$0]  %s3, 1024, %s237, [#allocation6], 64, 64, 4
        $region24: #{tpu_custom_call.1} parent=11 // pred_fallthru
          _
        // Predicated region
        $region25: #{tpu_custom_call.1} parent=11 // pred_check
          %p243 = pneg %p131
        $region26: #{tpu_custom_call.1} parent=11 // pred_check_branch
          %245 = sbr.rel (%p243) target = $region28
        $region27: #{tpu_custom_call.1} parent=11 // pred_region
          _
        $region28: #{tpu_custom_call.1} parent=11 // pred_fallthru
          _
        // Predicated region
        $region29: #{tpu_custom_call.1} parent=11 // pred_check
          %p246 = pneg %p152
        $region30: #{tpu_custom_call.1} parent=11 // pred_check_branch
          %248 = sbr.rel (%p246) target = $region32
        $region31: #{tpu_custom_call.1} parent=11 // pred_region
          %s250 = ssub.s32 2048, 2048
          %251 = vsyncadd [#allocation9], %s250
          %s252 = sshll.u32 [#allocation8], 4
          %s253 = int_to_ptr.vmem [resolvable:$true] %s252
          %258 = dma.hbm_to_vmem [thread:$0]  %s5, 2048, %s253, [#allocation9], 128, 128, 8
        $region32: #{tpu_custom_call.1} parent=11 // pred_fallthru
          _
        // Predicated region
        $region33: #{tpu_custom_call.1} parent=11 // pred_check
          %p259 = pneg %p173
        $region34: #{tpu_custom_call.1} parent=11 // pred_check_branch
          %261 = sbr.rel (%p259) target = $region36
        $region35: #{tpu_custom_call.1} parent=11 // pred_region
          _
        $region36: #{tpu_custom_call.1} parent=11 // pred_fallthru
          _
      $region12: #{tpu_custom_call.1} parent=5 // pred_fallthru
        _
      %p262 = scmp.lt.s32.totalorder %s21, 2
      // Predicated region
      $region37: #{tpu_custom_call.1} parent=5 // pred_check
        %p263 = pneg %p262
      $region38: #{tpu_custom_call.1} parent=5 // pred_check_branch
        %265 = sbr.rel (%p263) target = $region40
      $region39: #{tpu_custom_call.1} parent=5 // pred_region
        // Predicated region
        $region41: #{tpu_custom_call.1} parent=39 // pred_check
          %p266 = pneg %p41
        $region42: #{tpu_custom_call.1} parent=39 // pred_check_branch
          %268 = sbr.rel (%p266) target = $region44
        $region43: #{tpu_custom_call.1} parent=39 // pred_region
          %s269 = sand.u32 %s31, 1
          %s270 = scalar_lea.sflag [#allocation3], %s269
          %s271 = sand.u32 %s31, 1
          %s272 = smul.addr %s271, 16
          %s273 = scalar_lea.vmem [#allocation2], %s272
          %s274 = smul.u32 2, %s21
          %s276 = ssub.s32 256, 256
          %277 = vsyncadd %s270, %s276
          %s278 = smul.addr %s274, 128
          %s279 = scalar_lea.hbm %s0, %s278
          %s280 = sshll.u32 %s273, 4
          %s281 = int_to_ptr.vmem [resolvable:$true] %s280
          %286 = dma.hbm_to_vmem [thread:$0]  %s279, 256, %s281, %s270, 128, 128, 8
        $region44: #{tpu_custom_call.1} parent=39 // pred_fallthru
          _
      $region40: #{tpu_custom_call.1} parent=5 // pred_fallthru
        _
      %p287 = scmp.le.s32.totalorder 1, %s21
      %p288 = scmp.lt.s32.totalorder %s21, 3
      %p289 = pnand %p287, %p288
      %p290 = pneg %p289
      // Predicated region
      $region45: #{tpu_custom_call.1} parent=5 // pred_check
        _
      $region46: #{tpu_custom_call.1} parent=5 // pred_check_branch
        %292 = sbr.rel (%p289) target = $region48
      $region47: #{tpu_custom_call.1} parent=5 // pred_region
        %s293 = ssub.s32 %s21, 1
        %s294 = sand.u32 %s34, 1
        %s295 = scalar_lea.sflag [#allocation3], %s294
        %s296 = sand.u32 %s34, 1
        %s297 = smul.addr %s296, 16
        %s298 = scalar_lea.vmem [#allocation2], %s297
        // Predicated region
        $region49: #{tpu_custom_call.1} parent=47 // pred_check
          %p299 = pneg %p47
        $region50: #{tpu_custom_call.1} parent=47 // pred_check_branch
          %301 = sbr.rel (%p299) target = $region52
        $region51: #{tpu_custom_call.1} parent=47 // pred_region
          %302 = dma.done %s295, 256
        $region52: #{tpu_custom_call.1} parent=47 // pred_fallthru
          _
        // Predicated region
        $region53: #{tpu_custom_call.1} parent=47 // pred_check
          %p303 = pneg %p68
        $region54: #{tpu_custom_call.1} parent=47 // pred_check_branch
          %305 = sbr.rel (%p303) target = $region56
        $region55: #{tpu_custom_call.1} parent=47 // pred_region
          %306 = dma.done [#allocation6], 256
        $region56: #{tpu_custom_call.1} parent=47 // pred_fallthru
          _
        // Predicated region
        $region57: #{tpu_custom_call.1} parent=47 // pred_check
          %p307 = pneg %p110
        $region58: #{tpu_custom_call.1} parent=47 // pred_check_branch
          %309 = sbr.rel (%p307) target = $region60
        $region59: #{tpu_custom_call.1} parent=47 // pred_region
          %310 = dma.done [#allocation6], 1024
        $region60: #{tpu_custom_call.1} parent=47 // pred_fallthru
          _
        // Predicated region
        $region61: #{tpu_custom_call.1} parent=47 // pred_check
          %p311 = pneg %p152
        $region62: #{tpu_custom_call.1} parent=47 // pred_check_branch
          %313 = sbr.rel (%p311) target = $region64
        $region63: #{tpu_custom_call.1} parent=47 // pred_region
          %314 = dma.done [#allocation9], 2048
        $region64: #{tpu_custom_call.1} parent=47 // pred_fallthru
          _
        %s315 = sand.u32 %s34, 1
        %s316 = scalar_lea.sflag [#allocation3], %s315
        %s317 = sand.u32 %s34, 1
        %s318 = smul.addr %s317, 16
        %s319 = scalar_lea.vmem [#allocation2], %s318
        %p320 = pneg %p47
        %p321 = pneg %p44
        %p322 = pneg %p68
        %p323 = pneg %p65
        %p324 = pneg %p89
        %p325 = pneg %p86
        %p326 = pneg %p110
        %p327 = pneg %p107
        %p328 = pneg %p131
        %p329 = pneg %p128
        %p330 = pneg %p152
        %p331 = pneg %p149
        %p332 = pneg %p173
        %p333 = pneg %p170
        %p334 = pneg %p199
        %p335 = pneg %p196
        %s336 = sand.u32 %s186, 1
        %s337 = scalar_lea.sflag [#allocation4], %s336
        %s338 = sand.u32 %s186, 1
        %s339 = smul.addr %s338, 32
        %s340 = scalar_lea.vmem [#allocation10], %s339
        %s341 = smul.u32 2, %s26
        %s342 = smul.u32 2, %s26
        %v344 = vld [vmem:[%s298] sm:$0xff]
        %v345 = vld [vmem:[%s298 + $0x8] sm:$0xff]
        %v346 = vpack.c.bf16 %v345, %v344
        %v347 = vld [vmem:[#allocation5] sm:$0xf]
        %v348 = vld [vmem:[#allocation5 + $0x4] sm:$0xf]
        %v349 = vld [vmem:[#allocation5 + $0x8] sm:$0xf]
        %v350 = vld [vmem:[#allocation5 + $0xc] sm:$0xf]
        %v351 = vld [vmem:[%s2] sm:$0x1]
        %v353 = vlaneseq
        %v354 = vshrl.u32 %v353, 7
        %v355 = vsub.s32 0, %v354
        %v356 = vrot.slane %v351, %v355
        %v362 = vunpack.c.l.b16 %v347
        %v363 = vunpack.c.l.b16 %v348
        %v364 = vunpack.c.l.b16 %v349
        %v365 = vunpack.c.l.b16 %v350
        %v366 = vpack.c.b16 %v363, %v362
        %v367 = vpack.c.b16 %v365, %v364
        %vm370 = vcmask 261120
        %v372 = vsel %vm370, %v346, 0
        %374 = vmatprep.subr.bf16.mxu0 0
        %375 = vmatpush1.bf16.msra.mxu0 %v366
        %376 = vmatprep.subr.bf16.mxu0 0
        %377 = vmatpush1.bf16.msra.mxu0 %v367
        %378 = vmatprep.subr.bf16.mxu0 0
        %379 = vmatpush1.bf16.msra.mxu0 0
        %380 = vmatprep.subr.bf16.mxu0 0
        %381 = vmatpush1.bf16.msra.mxu0 0
        %382 = vmatprep.subr.bf16.mxu0 0
        %383 = vmatpush1.bf16.msra.mxu0 0
        %384 = vmatprep.subr.bf16.mxu0 0
        %385 = vmatpush1.bf16.msra.mxu0 0
        %386 = vmatprep.subr.bf16.mxu0 0
        %387 = vmatpush1.bf16.msra.mxu0 0
        %388 = vmatprep.subr.bf16.mxu0 0
        %389 = vmatpush1.bf16.msra.mxu0 0
        %390 = vmatprep.subr.bf16.mxu0 0
        %391 = vmatpush1.bf16.msra.mxu0 0
        %392 = vmatprep.subr.bf16.mxu0 0
        %393 = vmatpush1.bf16.msra.mxu0 0
        %394 = vmatprep.subr.bf16.mxu0 0
        %395 = vmatpush1.bf16.msra.mxu0 0
        %396 = vmatprep.subr.bf16.mxu0 0
        %397 = vmatpush1.bf16.msra.mxu0 0
        %398 = vmatprep.subr.bf16.mxu0 0
        %399 = vmatpush1.bf16.msra.mxu0 0
        %400 = vmatprep.subr.bf16.mxu0 0
        %401 = vmatpush1.bf16.msra.mxu0 0
        %402 = vmatprep.subr.bf16.mxu0 0
        %403 = vmatpush1.bf16.msra.mxu0 0
        %404 = vmatprep.subr.bf16.mxu0 0
        %405 = vmatpush1.bf16.msra.mxu0 0
        %406 = vmatprep.mubr.bf16.mxu0 0
        %407 = vmatmul.mubr.bf16.gmra.mrb[0].mxu0 %v372
        %v408 = vpop.f32.mrb[0].mxu0
        %v409 = vadd.f32 %v356, %v408
        %v410 = vpop.f32.mrb[0].mxu0
        %v411 = vpop.f32.mrb[0].mxu0
        %v412 = vadd.f32 %v356, %v411
        %v413 = vpop.f32.mrb[0].mxu0
        %414 = vdwg.mxu0
        %v415 = vmax.f32 %v409, 0.0
        %v416 = vmax.f32 %v412, 0.0
        %v417 = vand.u32 2147483647, %v409
        %v418 = vand.u32 2147483647, %v412
        %v419 = vsub.f32 0.0, %v417
        %v420 = vsub.f32 0.0, %v418
        %v421 = vmul.f32 %v419, 1.442695
        %v422 = vpow.pop %v421
        %v423 = vmul.f32 %v420, 1.442695
        %v424 = vpow.pop %v423
        %v425 = vadd.f32 %v422, 1.0
        %v426 = vlog2.pop %v425
        %v427 = vmul.f32 %v426, 0.6931472
        %v428 = vmul.f32 -0.5, %v422
        %v429 = vadd.f32 %v428, 1.0
        %v430 = vmul.f32 %v429, %v422
        %v431 = vand.u32 2147483647, %v422
        %vm432 = vcmp.lt.f32.partialorder %v431, 0.0004427343
        %v433 = vsel %vm432, %v430, %v427
        %v434 = vadd.f32 %v424, 1.0
        %v435 = vlog2.pop %v434
        %v436 = vmul.f32 %v435, 0.6931472
        %v437 = vmul.f32 -0.5, %v424
        %v438 = vadd.f32 %v437, 1.0
        %v439 = vmul.f32 %v438, %v424
        %v440 = vand.u32 2147483647, %v424
        %vm441 = vcmp.lt.f32.partialorder %v440, 0.0004427343
        %v442 = vsel %vm441, %v439, %v436
        %v443 = vadd.f32 %v415, %v433
        %v444 = vadd.f32 %v416, %v442
        %v445 = vpack.c.bf16 %v444, %v443
        %v446 = vld [vmem:[#allocation7] sm:$0xf]
        %v447 = vld [vmem:[#allocation7 + $0x4] sm:$0xf]
        %v448 = vld [vmem:[#allocation7 + $0x8] sm:$0xf]
        %v449 = vld [vmem:[#allocation7 + $0xc] sm:$0xf]
        %v450 = vld [vmem:[#allocation7 + $0x10] sm:$0xf]
        %v451 = vld [vmem:[#allocation7 + $0x14] sm:$0xf]
        %v452 = vld [vmem:[#allocation7 + $0x18] sm:$0xf]
        %v453 = vld [vmem:[#allocation7 + $0x1c] sm:$0xf]
        %v454 = vld [vmem:[#allocation7 + $0x20] sm:$0xf]
        %v455 = vld [vmem:[#allocation7 + $0x24] sm:$0xf]
        %v456 = vld [vmem:[#allocation7 + $0x28] sm:$0xf]
        %v457 = vld [vmem:[#allocation7 + $0x2c] sm:$0xf]
        %v458 = vld [vmem:[#allocation7 + $0x30] sm:$0xf]
        %v459 = vld [vmem:[#allocation7 + $0x34] sm:$0xf]
        %v460 = vld [vmem:[#allocation7 + $0x38] sm:$0xf]
        %v461 = vld [vmem:[#allocation7 + $0x3c] sm:$0xf]
        %v462 = vld [vmem:[%s4] sm:$0x1]
        %v464 = vlaneseq
        %v465 = vshrl.u32 %v464, 7
        %v466 = vsub.s32 0, %v465
        %v467 = vrot.slane %v462, %v466
        %v485 = vunpack.c.l.b16 %v446
        %v486 = vunpack.c.l.b16 %v447
        %v487 = vunpack.c.l.b16 %v448
        %v488 = vunpack.c.l.b16 %v449
        %v489 = vunpack.c.l.b16 %v450
        %v490 = vunpack.c.l.b16 %v451
        %v491 = vunpack.c.l.b16 %v452
        %v492 = vunpack.c.l.b16 %v453
        %v493 = vunpack.c.l.b16 %v454
        %v494 = vunpack.c.l.b16 %v455
        %v495 = vunpack.c.l.b16 %v456
        %v496 = vunpack.c.l.b16 %v457
        %v497 = vunpack.c.l.b16 %v458
        %v498 = vunpack.c.l.b16 %v459
        %v499 = vunpack.c.l.b16 %v460
        %v500 = vunpack.c.l.b16 %v461
        %v501 = vpack.c.b16 %v486, %v485
        %v502 = vpack.c.b16 %v488, %v487
        %v503 = vpack.c.b16 %v490, %v489
        %v504 = vpack.c.b16 %v492, %v491
        %v505 = vpack.c.b16 %v494, %v493
        %v506 = vpack.c.b16 %v496, %v495
        %v507 = vpack.c.b16 %v498, %v497
        %v508 = vpack.c.b16 %v500, %v499
        %517 = vmatprep.subr.bf16.mxu0 0
        %518 = vmatpush1.bf16.msra.mxu0 %v501
        %519 = vmatprep.subr.bf16.mxu0 0
        %520 = vmatpush1.bf16.msra.mxu0 %v502
        %521 = vmatprep.subr.bf16.mxu0 0
        %522 = vmatpush1.bf16.msra.mxu0 %v503
        %523 = vmatprep.subr.bf16.mxu0 0
        %524 = vmatpush1.bf16.msra.mxu0 %v504
        %525 = vmatprep.subr.bf16.mxu0 0
        %526 = vmatpush1.bf16.msra.mxu0 %v505
        %527 = vmatprep.subr.bf16.mxu0 0
        %528 = vmatpush1.bf16.msra.mxu0 %v506
        %529 = vmatprep.subr.bf16.mxu0 0
        %530 = vmatpush1.bf16.msra.mxu0 %v507
        %531 = vmatprep.subr.bf16.mxu0 0
        %532 = vmatpush1.bf16.msra.mxu0 %v508
        %533 = vmatprep.subr.bf16.mxu0 0
        %534 = vmatpush1.bf16.msra.mxu0 0
        %535 = vmatprep.subr.bf16.mxu0 0
        %536 = vmatpush1.bf16.msra.mxu0 0
        %537 = vmatprep.subr.bf16.mxu0 0
        %538 = vmatpush1.bf16.msra.mxu0 0
        %539 = vmatprep.subr.bf16.mxu0 0
        %540 = vmatpush1.bf16.msra.mxu0 0
        %541 = vmatprep.subr.bf16.mxu0 0
        %542 = vmatpush1.bf16.msra.mxu0 0
        %543 = vmatprep.subr.bf16.mxu0 0
        %544 = vmatpush1.bf16.msra.mxu0 0
        %545 = vmatprep.subr.bf16.mxu0 0
        %546 = vmatpush1.bf16.msra.mxu0 0
        %547 = vmatprep.subr.bf16.mxu0 0
        %548 = vmatpush1.bf16.msra.mxu0 0
        %549 = vmatprep.mubr.bf16.mxu0 0
        %550 = vmatmul.mubr.bf16.gmra.mrb[0].mxu0 %v445
        %v551 = vpop.f32.mrb[0].mxu0
        %v552 = vadd.f32 %v467, %v551
        %v553 = vpop.f32.mrb[0].mxu0
        %v554 = vpop.f32.mrb[0].mxu0
        %v555 = vadd.f32 %v467, %v554
        %v556 = vpop.f32.mrb[0].mxu0
        %557 = vdwg.mxu0
        %v558 = vmax.f32 %v552, 0.0
        %v559 = vmax.f32 %v555, 0.0
        %v560 = vand.u32 2147483647, %v552
        %v561 = vand.u32 2147483647, %v555
        %v562 = vsub.f32 0.0, %v560
        %v563 = vsub.f32 0.0, %v561
        %v564 = vmul.f32 %v562, 1.442695
        %v565 = vpow.pop %v564
        %v566 = vmul.f32 %v563, 1.442695
        %v567 = vpow.pop %v566
        %v568 = vadd.f32 %v565, 1.0
        %v569 = vlog2.pop %v568
        %v570 = vmul.f32 %v569, 0.6931472
        %v571 = vmul.f32 -0.5, %v565
        %v572 = vadd.f32 %v571, 1.0
        %v573 = vmul.f32 %v572, %v565
        %v574 = vand.u32 2147483647, %v565
        %vm575 = vcmp.lt.f32.partialorder %v574, 0.0004427343
        %v576 = vsel %vm575, %v573, %v570
        %v577 = vadd.f32 %v567, 1.0
        %v578 = vlog2.pop %v577
        %v579 = vmul.f32 %v578, 0.6931472
        %v580 = vmul.f32 -0.5, %v567
        %v581 = vadd.f32 %v580, 1.0
        %v582 = vmul.f32 %v581, %v567
        %v583 = vand.u32 2147483647, %v567
        %vm584 = vcmp.lt.f32.partialorder %v583, 0.0004427343
        %v585 = vsel %vm584, %v582, %v579
        %v586 = vadd.f32 %v558, %v576
        %v587 = vadd.f32 %v559, %v585
        %v588 = vpack.c.bf16 %v587, %v586
        %v589 = vld [vmem:[#allocation8] sm:$0xff]
        %v590 = vld [vmem:[#allocation8 + $0x8] sm:$0xff]
        %v591 = vld [vmem:[#allocation8 + $0x10] sm:$0xff]
        %v592 = vld [vmem:[#allocation8 + $0x18] sm:$0xff]
        %v593 = vld [vmem:[#allocation8 + $0x20] sm:$0xff]
        %v594 = vld [vmem:[#allocation8 + $0x28] sm:$0xff]
        %v595 = vld [vmem:[#allocation8 + $0x30] sm:$0xff]
        %v596 = vld [vmem:[#allocation8 + $0x38] sm:$0xff]
        %v597 = vld [vmem:[#allocation8 + $0x40] sm:$0xff]
        %v598 = vld [vmem:[#allocation8 + $0x48] sm:$0xff]
        %v599 = vld [vmem:[#allocation8 + $0x50] sm:$0xff]
        %v600 = vld [vmem:[#allocation8 + $0x58] sm:$0xff]
        %v601 = vld [vmem:[#allocation8 + $0x60] sm:$0xff]
        %v602 = vld [vmem:[#allocation8 + $0x68] sm:$0xff]
        %v603 = vld [vmem:[#allocation8 + $0x70] sm:$0xff]
        %v604 = vld [vmem:[#allocation8 + $0x78] sm:$0xff]
        %v605 = vld [vmem:[%s6] sm:$0x3]
        %v607 = vlaneseq
        %v608 = vshrl.u32 %v607, 7
        %v609 = vsub.s32 0, %v608
        %v610 = vrot.slane %v605, %v609
        %v611 = vlaneseq
        %v612 = vshrl.u32 %v611, 7
        %v613 = vsub.s32 1, %v612
        %v614 = vrot.slane %v605, %v613
        %v633 = vunpack.c.l.b16 %v589
        %v634 = vunpack.c.h.b16 %v589
        %v635 = vunpack.c.l.b16 %v590
        %v636 = vunpack.c.h.b16 %v590
        %v637 = vunpack.c.l.b16 %v591
        %v638 = vunpack.c.h.b16 %v591
        %v639 = vunpack.c.l.b16 %v592
        %v640 = vunpack.c.h.b16 %v592
        %v641 = vunpack.c.l.b16 %v593
        %v642 = vunpack.c.h.b16 %v593
        %v643 = vunpack.c.l.b16 %v594
        %v644 = vunpack.c.h.b16 %v594
        %v645 = vunpack.c.l.b16 %v595
        %v646 = vunpack.c.h.b16 %v595
        %v647 = vunpack.c.l.b16 %v596
        %v648 = vunpack.c.h.b16 %v596
        %v649 = vunpack.c.l.b16 %v597
        %v650 = vunpack.c.h.b16 %v597
        %v651 = vunpack.c.l.b16 %v598
        %v652 = vunpack.c.h.b16 %v598
        %v653 = vunpack.c.l.b16 %v599
        %v654 = vunpack.c.h.b16 %v599
        %v655 = vunpack.c.l.b16 %v600
        %v656 = vunpack.c.h.b16 %v600
        %v657 = vunpack.c.l.b16 %v601
        %v658 = vunpack.c.h.b16 %v601
        %v659 = vunpack.c.l.b16 %v602
        %v660 = vunpack.c.h.b16 %v602
        %v661 = vunpack.c.l.b16 %v603
        %v662 = vunpack.c.h.b16 %v603
        %v663 = vunpack.c.l.b16 %v604
        %v664 = vunpack.c.h.b16 %v604
        %v665 = vpack.c.b16 %v635, %v633
        %v666 = vpack.c.b16 %v636, %v634
        %v667 = vpack.c.b16 %v639, %v637
        %v668 = vpack.c.b16 %v640, %v638
        %v669 = vpack.c.b16 %v643, %v641
        %v670 = vpack.c.b16 %v644, %v642
        %v671 = vpack.c.b16 %v647, %v645
        %v672 = vpack.c.b16 %v648, %v646
        %v673 = vpack.c.b16 %v651, %v649
        %v674 = vpack.c.b16 %v652, %v650
        %v675 = vpack.c.b16 %v655, %v653
        %v676 = vpack.c.b16 %v656, %v654
        %v677 = vpack.c.b16 %v659, %v657
        %v678 = vpack.c.b16 %v660, %v658
        %v679 = vpack.c.b16 %v663, %v661
        %v680 = vpack.c.b16 %v664, %v662
        %697 = vmatprep.subr.bf16.mxu0 %v666
        %698 = vmatpush1.bf16.msra.mxu0 %v665
        %699 = vmatprep.subr.bf16.mxu0 %v668
        %700 = vmatpush1.bf16.msra.mxu0 %v667
        %701 = vmatprep.subr.bf16.mxu0 %v670
        %702 = vmatpush1.bf16.msra.mxu0 %v669
        %703 = vmatprep.subr.bf16.mxu0 %v672
        %704 = vmatpush1.bf16.msra.mxu0 %v671
        %705 = vmatprep.subr.bf16.mxu0 %v674
        %706 = vmatpush1.bf16.msra.mxu0 %v673
        %707 = vmatprep.subr.bf16.mxu0 %v676
        %708 = vmatpush1.bf16.msra.mxu0 %v675
        %709 = vmatprep.subr.bf16.mxu0 %v678
        %710 = vmatpush1.bf16.msra.mxu0 %v677
        %711 = vmatprep.subr.bf16.mxu0 %v680
        %712 = vmatpush1.bf16.msra.mxu0 %v679
        %713 = vmatprep.subr.bf16.mxu0 0
        %714 = vmatpush1.bf16.msra.mxu0 0
        %715 = vmatprep.subr.bf16.mxu0 0
        %716 = vmatpush1.bf16.msra.mxu0 0
        %717 = vmatprep.subr.bf16.mxu0 0
        %718 = vmatpush1.bf16.msra.mxu0 0
        %719 = vmatprep.subr.bf16.mxu0 0
        %720 = vmatpush1.bf16.msra.mxu0 0
        %721 = vmatprep.subr.bf16.mxu0 0
        %722 = vmatpush1.bf16.msra.mxu0 0
        %723 = vmatprep.subr.bf16.mxu0 0
        %724 = vmatpush1.bf16.msra.mxu0 0
        %725 = vmatprep.subr.bf16.mxu0 0
        %726 = vmatpush1.bf16.msra.mxu0 0
        %727 = vmatprep.subr.bf16.mxu0 0
        %728 = vmatpush1.bf16.msra.mxu0 0
        %729 = vmatprep.mubr.bf16.mxu0 0
        %730 = vmatmul.mubr.bf16.gmra.mrb[0].mxu0 %v588
        %v731 = vpop.f32.mrb[0].mxu0
        %v732 = vadd.f32 %v610, %v731
        %v733 = vpop.f32.mrb[0].mxu0
        %v734 = vadd.f32 %v614, %v733
        %v735 = vpop.f32.mrb[0].mxu0
        %v736 = vadd.f32 %v610, %v735
        %v737 = vpop.f32.mrb[0].mxu0
        %v738 = vadd.f32 %v614, %v737
        %739 = vdwg.mxu0
        %740 = vst [vmem:[%s340] sm:$0xff] %v732
        %741 = vst [vmem:[%s340 + $0x10] sm:$0xff] %v736
        %v742 = vmul.f32 %v734, 1.442695
        %v743 = vpow.pop %v742
        %v744 = vmul.f32 %v738, 1.442695
        %v745 = vpow.pop %v744
        %746 = vst [vmem:[%s340 + $0x8] sm:$0xff] %v743
        %747 = vst [vmem:[%s340 + $0x18] sm:$0xff] %v745
        %s748 = sand.u32 %s186, 1
        %s749 = scalar_lea.sflag [#allocation4], %s748
        %s750 = sand.u32 %s186, 1
        %s751 = smul.addr %s750, 32
        %s752 = scalar_lea.vmem [#allocation10], %s751
        // Predicated region
        $region65: #{tpu_custom_call.1} parent=47 // pred_check
          %p753 = pneg %p196
        $region66: #{tpu_custom_call.1} parent=47 // pred_check_branch
          %755 = sbr.rel (%p753) target = $region68
        $region67: #{tpu_custom_call.1} parent=47 // pred_region
          %s756 = smul.u32 2, %s26
          %s758 = ssub.s32 512, 512
          %759 = vsyncadd %s749, %s758
          %s760 = smul.addr %s756, 2
          %s761 = smul.addr %s760, 128
          %s762 = scalar_lea.hbm %s7, %s761
          %s763 = sshll.u32 %s752, 4
          %s764 = int_to_ptr.vmem [resolvable:$true] %s763
          %769 = dma.vmem_to_hbm [thread:$0]  %s764, 512, %s762, %s749, 256, 256, 16
        $region68: #{tpu_custom_call.1} parent=47 // pred_fallthru
          _
      $region48: #{tpu_custom_call.1} parent=5 // pred_fallthru
        _
      %p770 = scmp.le.s32.totalorder 2, %s21
      // Predicated region
      $region69: #{tpu_custom_call.1} parent=5 // pred_check
        %p771 = pneg %p770
      $region70: #{tpu_custom_call.1} parent=5 // pred_check_branch
        %773 = sbr.rel (%p771) target = $region72
      $region71: #{tpu_custom_call.1} parent=5 // pred_region
        %s774 = ssub.s32 %s21, 2
        // Predicated region
        $region73: #{tpu_custom_call.1} parent=71 // pred_check
          %p775 = pneg %p202
        $region74: #{tpu_custom_call.1} parent=71 // pred_check_branch
          %777 = sbr.rel (%p775) target = $region76
        $region75: #{tpu_custom_call.1} parent=71 // pred_region
          %s778 = sand.u32 %s187, 1
          %s779 = scalar_lea.sflag [#allocation4], %s778
          %s780 = sand.u32 %s187, 1
          %s781 = smul.addr %s780, 32
          %s782 = scalar_lea.vmem [#allocation10], %s781
          %783 = dma.done %s779, 512
        $region76: #{tpu_custom_call.1} parent=71 // pred_fallthru
          _
      $region72: #{tpu_custom_call.1} parent=5 // pred_fallthru
        _
    $region6: #{tpu_custom_call.1} parent=1 // loop_footer
      %s25 = sadd.s32 1, %s21
    $region7: #{tpu_custom_call.1} parent=1 // loop_footer_branch
      %20 = sbr.rel target = $region3
    $region8: #{tpu_custom_call.1} parent=1 // loop_exit
      _
    %784 = vsyncpa [#allocation3], 1
    %s785 = scalar_lea.sflag [#allocation3], 1
    %786 = vsyncpa %s785, 1
    %787 = vsyncpa [#allocation6], 1
    %788 = vsyncpa [#allocation9], 1
    %789 = vsyncpa [#allocation4], 1
    %s790 = scalar_lea.sflag [#allocation4], 1
    %791 = vsyncpa %s790, 1

// kernel: tpu_custom_call.1
$region0: #{tpu_custom_call.1}
  #allocation0 [shape = 'u32[]', space=smem, size = 0x4, offset = 0x4, fixed_abs, tag = 'smem constant byte address 0x4 - core index']
  #allocation1 [shape = 'u32[144,128]{1,0:T(1,128)}', space=vmem, size = 0x12000, scoped, tag = 'internal scratch']
  %s0 = inlined_call_operand.hbm [shape: f32[32,32], index: 0, kind: input, shape index: {}]
  %s1 = inlined_call_operand.hbm [shape: bf16[32,128], index: 1, kind: input, shape index: {}]
  %s2 = inlined_call_operand.vmem [shape: f32[1,128], index: 2, kind: input, shape index: {}]
  %s3 = inlined_call_operand.hbm [shape: bf16[128,128], index: 3, kind: input, shape index: {}]
  %s4 = inlined_call_operand.vmem [shape: f32[1,128], index: 4, kind: input, shape index: {}]
  %s5 = inlined_call_operand.hbm [shape: bf16[128,256], index: 5, kind: input, shape index: {}]
  %s6 = inlined_call_operand.vmem [shape: f32[1,256], index: 6, kind: input, shape index: {}]
  %s7 = inlined_call_operand.hbm [shape: f32[32,256], index: 7, kind: output, shape index: {}]
  %s8 = sld [smem:[#allocation0]]
  $region77: #{tpu_custom_call.1} parent=0
    _
  %s10 = ssub.s32 1, %s8
  %s11 = scalar_select 0, %s10, %s8
  $region1: #{tpu_custom_call.1} parent=0
    #allocation2 [shape = 'u8[16384]{0}', space=vmem, size = 0x4000, scoped, tag = 'input window, operand 0']
    #allocation3 [shape = 's32[2]{0}', space=sflag, size = 0x8, scoped, tag = 'scoped memory for tpu_custom_call.1']
    #allocation4 [shape = 's32[2]{0}', space=sflag, size = 0x8, scoped, tag = 'scoped memory for tpu_custom_call.1']
    #allocation5 [shape = 'u8[8192]{0}', space=vmem, size = 0x2000, scoped, tag = 'input window, operand 1, single buffered']
    #allocation6 [shape = 's32[1]{0}', space=sflag, size = 0x4, scoped, tag = 'scoped memory for tpu_custom_call.1']
    #allocation7 [shape = 'u8[32768]{0}', space=vmem, size = 0x8000, scoped, tag = 'input window, operand 3, single buffered']
    #allocation8 [shape = 'u8[65536]{0}', space=vmem, size = 0x10000, scoped, tag = 'input window, operand 5, single buffered']
    #allocation9 [shape = 's32[1]{0}', space=sflag, size = 0x4, scoped, tag = 'scoped memory for tpu_custom_call.1']
    #allocation10 [shape = 'u8[32768]{0}', space=vmem, size = 0x8000, scoped, tag = 'output window, operand 0']
    %12 = vsyncpa [#allocation3], 0
    %s13 = scalar_lea.sflag [#allocation3], 1
    %14 = vsyncpa %s13, 0
    %15 = vsyncpa [#allocation6], 0
    %16 = vsyncpa [#allocation9], 0
    %17 = vsyncpa [#allocation4], 0
    %s18 = scalar_lea.sflag [#allocation4], 1
    %19 = vsyncpa %s18, 0
    loop: start=0, step=1, limit=4
    $region2: #{tpu_custom_call.1} parent=1 // loop_pre_header
      _
    $region3: #{tpu_custom_call.1} parent=1 // loop_header
      %s21 = sphi 0, %s25
      %p22 = scmp.ge.s32.totalorder %s21, 4
      %s31 = sphi 0, %s33
      %s34 = sphi 0, %s31
      %s35 = sphi 0, %s34
      %s51 = sphi 0, %s35
      %s55 = sphi 0, %s55
      %s57 = sphi 0, %s55
      %s58 = sphi 0, %s57
      %s72 = sphi 0, %s58
      %s76 = sphi 0, %s76
      %s78 = sphi 0, %s76
      %s79 = sphi 0, %s78
      %s93 = sphi 0, %s79
      %s97 = sphi 0, %s97
      %s99 = sphi 0, %s97
      %s100 = sphi 0, %s99
      %s114 = sphi 0, %s100
      %s118 = sphi 0, %s118
      %s120 = sphi 0, %s118
      %s121 = sphi 0, %s120
      %s135 = sphi 0, %s121
      %s139 = sphi 0, %s139
      %s141 = sphi 0, %s139
      %s142 = sphi 0, %s141
      %s156 = sphi 0, %s142
      %s160 = sphi 0, %s160
      %s162 = sphi 0, %s160
      %s163 = sphi 0, %s162
      %s177 = sphi 0, %s163
      %s183 = sphi 0, %s185
      %s186 = sphi 0, %s183
      %s187 = sphi 0, %s186
      %s203 = sphi 0, %s187
    $region4: #{tpu_custom_call.1} parent=1 // loop_header_branch
      %24 = sbr.rel (%p22) target = $region8
    $region5: #{tpu_custom_call.1} parent=1 // loop_body
      %s26 = ssub.s32 %s21, 1
      %s27 = ssub.s32 %s21, 2
      %s28 = sadd.s32 %s21, 1
      %s29 = ssub.s32 %s21, %s28
      %p30 = scmp.eq.s32.totalorder %s29, 0
      %s32 = sadd.s32 %s31, 1
      %s33 = scalar_select %p30, %s31, %s32
      %p36 = pneg %p30
      %p37 = scmp.eq.s32.totalorder %s21, 1
      %p38 = por %p36, %p37
      %p39 = scmp.ne.s32.totalorder %s31, %s34
      %p40 = scmp.eq.s32.totalorder %s21, 0
      %p41 = por %p39, %p40
      %p42 = scmp.ne.s32.totalorder %s31, %s34
      %p43 = scmp.eq.s32.totalorder %s26, 1
      %p44 = por %p42, %p43
      %p45 = scmp.ne.s32.totalorder %s34, %s35
      %p46 = scmp.eq.s32.totalorder %s26, 0
      %p47 = por %p45, %p46
      %p48 = scmp.ne.s32.totalorder %s34, %s35
      %p49 = scmp.eq.s32.totalorder %s27, 1
      %p50 = por %p48, %p49
      %p52 = scmp.ne.s32.totalorder %s35, %s51
      %p53 = scmp.eq.s32.totalorder %s27, 0
      %p54 = por %p52, %p53
      %s56 = sadd.s32 %s55, 1
      %p59 = scmp.eq.s32.totalorder %s21, 1
      %p60 = scmp.ne.s32.totalorder %s55, %s57
      %p61 = scmp.eq.s32.totalorder %s21, 0
      %p62 = por %p60, %p61
      %p63 = scmp.ne.s32.totalorder %s55, %s57
      %p64 = scmp.eq.s32.totalorder %s26, 1
      %p65 = por %p63, %p64
      %p66 = scmp.ne.s32.totalorder %s57, %s58
      %p67 = scmp.eq.s32.totalorder %s26, 0
      %p68 = por %p66, %p67
      %p69 = scmp.ne.s32.totalorder %s57, %s58
      %p70 = scmp.eq.s32.totalorder %s27, 1
      %p71 = por %p69, %p70
      %p73 = scmp.ne.s32.totalorder %s58, %s72
      %p74 = scmp.eq.s32.totalorder %s27, 0
      %p75 = por %p73, %p74
      %s77 = sadd.s32 %s76, 1
      %p80 = scmp.eq.s32.totalorder %s21, 1
      %p81 = scmp.ne.s32.totalorder %s76, %s78
      %p82 = scmp.eq.s32.totalorder %s21, 0
      %p83 = por %p81, %p82
      %p84 = scmp.ne.s32.totalorder %s76, %s78
      %p85 = scmp.eq.s32.totalorder %s26, 1
      %p86 = por %p84, %p85
      %p87 = scmp.ne.s32.totalorder %s78, %s79
      %p88 = scmp.eq.s32.totalorder %s26, 0
      %p89 = por %p87, %p88
      %p90 = scmp.ne.s32.totalorder %s78, %s79
      %p91 = scmp.eq.s32.totalorder %s27, 1
      %p92 = por %p90, %p91
      %p94 = scmp.ne.s32.totalorder %s79, %s93
      %p95 = scmp.eq.s32.totalorder %s27, 0
      %p96 = por %p94, %p95
      %s98 = sadd.s32 %s97, 1
      %p101 = scmp.eq.s32.totalorder %s21, 1
      %p102 = scmp.ne.s32.totalorder %s97, %s99
      %p103 = scmp.eq.s32.totalorder %s21, 0
      %p104 = por %p102, %p103
      %p105 = scmp.ne.s32.totalorder %s97, %s99
      %p106 = scmp.eq.s32.totalorder %s26, 1
      %p107 = por %p105, %p106
      %p108 = scmp.ne.s32.totalorder %s99, %s100
      %p109 = scmp.eq.s32.totalorder %s26, 0
      %p110 = por %p108, %p109
      %p111 = scmp.ne.s32.totalorder %s99, %s100
      %p112 = scmp.eq.s32.totalorder %s27, 1
      %p113 = por %p111, %p112
      %p115 = scmp.ne.s32.totalorder %s100, %s114
      %p116 = scmp.eq.s32.totalorder %s27, 0
      %p117 = por %p115, %p116
      %s119 = sadd.s32 %s118, 1
      %p122 = scmp.eq.s32.totalorder %s21, 1
      %p123 = scmp.ne.s32.totalorder %s118, %s120
      %p124 = scmp.eq.s32.totalorder %s21, 0
      %p125 = por %p123, %p124
      %p126 = scmp.ne.s32.totalorder %s118, %s120
      %p127 = scmp.eq.s32.totalorder %s26, 1
      %p128 = por %p126, %p127
      %p129 = scmp.ne.s32.totalorder %s120, %s121
      %p130 = scmp.eq.s32.totalorder %s26, 0
      %p131 = por %p129, %p130
      %p132 = scmp.ne.s32.totalorder %s120, %s121
      %p133 = scmp.eq.s32.totalorder %s27, 1
      %p134 = por %p132, %p133
      %p136 = scmp.ne.s32.totalorder %s121, %s135
      %p137 = scmp.eq.s32.totalorder %s27, 0
      %p138 = por %p136, %p137
      %s140 = sadd.s32 %s139, 1
      %p143 = scmp.eq.s32.totalorder %s21, 1
      %p144 = scmp.ne.s32.totalorder %s139, %s141
      %p145 = scmp.eq.s32.totalorder %s21, 0
      %p146 = por %p144, %p145
      %p147 = scmp.ne.s32.totalorder %s139, %s141
      %p148 = scmp.eq.s32.totalorder %s26, 1
      %p149 = por %p147, %p148
      %p150 = scmp.ne.s32.totalorder %s141, %s142
      %p151 = scmp.eq.s32.totalorder %s26, 0
      %p152 = por %p150, %p151
      %p153 = scmp.ne.s32.totalorder %s141, %s142
      %p154 = scmp.eq.s32.totalorder %s27, 1
      %p155 = por %p153, %p154
      %p157 = scmp.ne.s32.totalorder %s142, %s156
      %p158 = scmp.eq.s32.totalorder %s27, 0
      %p159 = por %p157, %p158
      %s161 = sadd.s32 %s160, 1
      %p164 = scmp.eq.s32.totalorder %s21, 1
      %p165 = scmp.ne.s32.totalorder %s160, %s162
      %p166 = scmp.eq.s32.totalorder %s21, 0
      %p167 = por %p165, %p166
      %p168 = scmp.ne.s32.totalorder %s160, %s162
      %p169 = scmp.eq.s32.totalorder %s26, 1
      %p170 = por %p168, %p169
      %p171 = scmp.ne.s32.totalorder %s162, %s163
      %p172 = scmp.eq.s32.totalorder %s26, 0
      %p173 = por %p171, %p172
      %p174 = scmp.ne.s32.totalorder %s162, %s163
      %p175 = scmp.eq.s32.totalorder %s27, 1
      %p176 = por %p174, %p175
      %p178 = scmp.ne.s32.totalorder %s163, %s177
      %p179 = scmp.eq.s32.totalorder %s27, 0
      %p180 = por %p178, %p179
      %s181 = ssub.s32 %s21, %s28
      %p182 = scmp.eq.s32.totalorder %s181, 0
      %s184 = sadd.s32 %s183, 1
      %s185 = scalar_select %p182, %s183, %s184
      %p188 = pneg %p182
      %p189 = scmp.eq.s32.totalorder %s21, 1
      %p190 = por %p188, %p189
      %p191 = scmp.ne.s32.totalorder %s183, %s186
      %p192 = scmp.eq.s32.totalorder %s21, 0
      %p193 = por %p191, %p192
      %p194 = scmp.ne.s32.totalorder %s183, %s186
      %p195 = scmp.eq.s32.totalorder %s26, 1
      %p196 = por %p194, %p195
      %p197 = scmp.ne.s32.totalorder %s186, %s187
      %p198 = scmp.eq.s32.totalorder %s26, 0
      %p199 = por %p197, %p198
      %p200 = scmp.ne.s32.totalorder %s186, %s187
      %p201 = scmp.eq.s32.totalorder %s27, 1
      %p202 = por %p200, %p201
      %p204 = scmp.ne.s32.totalorder %s187, %s203
      %p205 = scmp.eq.s32.totalorder %s27, 0
      %p206 = por %p204, %p205
      %p207 = scmp.le.s32.totalorder 1, %s21
      %p208 = scmp.lt.s32.totalorder %s21, 3
      %p209 = pnand %p207, %p208
      %p210 = pneg %p209
      // Predicated region
      $region9: #{tpu_custom_call.1} parent=5 // pred_check
        _
      $region10: #{tpu_custom_call.1} parent=5 // pred_check_branch
        %212 = sbr.rel (%p209) target = $region12
      $region11: #{tpu_custom_call.1} parent=5 // pred_region
        %s213 = ssub.s32 %s21, 1
        // Predicated region
        $region13: #{tpu_custom_call.1} parent=11 // pred_check
          %p214 = pneg %p68
        $region14: #{tpu_custom_call.1} parent=11 // pred_check_branch
          %216 = sbr.rel (%p214) target = $region16
        $region15: #{tpu_custom_call.1} parent=11 // pred_region
          %s218 = ssub.s32 256, 256
          %219 = vsyncadd [#allocation6], %s218
          %s220 = sshll.u32 [#allocation5], 4
          %s221 = int_to_ptr.vmem [resolvable:$true] %s220
          %226 = dma.hbm_to_vmem [thread:$0]  %s1, 256, %s221, [#allocation6], 64, 64, 4
        $region16: #{tpu_custom_call.1} parent=11 // pred_fallthru
          _
        // Predicated region
        $region17: #{tpu_custom_call.1} parent=11 // pred_check
          %p227 = pneg %p89
        $region18: #{tpu_custom_call.1} parent=11 // pred_check_branch
          %229 = sbr.rel (%p227) target = $region20
        $region19: #{tpu_custom_call.1} parent=11 // pred_region
          _
        $region20: #{tpu_custom_call.1} parent=11 // pred_fallthru
          _
        // Predicated region
        $region21: #{tpu_custom_call.1} parent=11 // pred_check
          %p230 = pneg %p110
        $region22: #{tpu_custom_call.1} parent=11 // pred_check_branch
          %232 = sbr.rel (%p230) target = $region24
        $region23: #{tpu_custom_call.1} parent=11 // pred_region
          %s234 = ssub.s32 1024, 1024
          %235 = vsyncadd [#allocation6], %s234
          %s236 = sshll.u32 [#allocation7], 4
          %s237 = int_to_ptr.vmem [resolvable:$true] %s236
          %242 = dma.hbm_to_vmem [thread:$0]  %s3, 1024, %s237, [#allocation6], 64, 64, 4
        $region24: #{tpu_custom_call.1} parent=11 // pred_fallthru
          _
        // Predicated region
        $region25: #{tpu_custom_call.1} parent=11 // pred_check
          %p243 = pneg %p131
        $region26: #{tpu_custom_call.1} parent=11 // pred_check_branch
          %245 = sbr.rel (%p243) target = $region28
        $region27: #{tpu_custom_call.1} parent=11 // pred_region
          _
        $region28: #{tpu_custom_call.1} parent=11 // pred_fallthru
          _
        // Predicated region
        $region29: #{tpu_custom_call.1} parent=11 // pred_check
          %p246 = pneg %p152
        $region30: #{tpu_custom_call.1} parent=11 // pred_check_branch
          %248 = sbr.rel (%p246) target = $region32
        $region31: #{tpu_custom_call.1} parent=11 // pred_region
          %s250 = ssub.s32 2048, 2048
          %251 = vsyncadd [#allocation9], %s250
          %s252 = sshll.u32 [#allocation8], 4
          %s253 = int_to_ptr.vmem [resolvable:$true] %s252
          %258 = dma.hbm_to_vmem [thread:$0]  %s5, 2048, %s253, [#allocation9], 128, 128, 8
        $region32: #{tpu_custom_call.1} parent=11 // pred_fallthru
          _
        // Predicated region
        $region33: #{tpu_custom_call.1} parent=11 // pred_check
          %p259 = pneg %p173
        $region34: #{tpu_custom_call.1} parent=11 // pred_check_branch
          %261 = sbr.rel (%p259) target = $region36
        $region35: #{tpu_custom_call.1} parent=11 // pred_region
          _
        $region36: #{tpu_custom_call.1} parent=11 // pred_fallthru
          _
      $region12: #{tpu_custom_call.1} parent=5 // pred_fallthru
        _
      %p262 = scmp.lt.s32.totalorder %s21, 2
      // Predicated region
      $region37: #{tpu_custom_call.1} parent=5 // pred_check
        %p263 = pneg %p262
      $region38: #{tpu_custom_call.1} parent=5 // pred_check_branch
        %265 = sbr.rel (%p263) target = $region40
      $region39: #{tpu_custom_call.1} parent=5 // pred_region
        // Predicated region
        $region41: #{tpu_custom_call.1} parent=39 // pred_check
          %p266 = pneg %p41
        $region42: #{tpu_custom_call.1} parent=39 // pred_check_branch
          %268 = sbr.rel (%p266) target = $region44
        $region43: #{tpu_custom_call.1} parent=39 // pred_region
          %s269 = sand.u32 %s31, 1
          %s270 = scalar_lea.sflag [#allocation3], %s269
          %s271 = sand.u32 %s31, 1
          %s272 = smul.addr %s271, 16
          %s273 = scalar_lea.vmem [#allocation2], %s272
          %s274 = smul.u32 2, %s21
          %s276 = ssub.s32 256, 256
          %277 = vsyncadd %s270, %s276
          %s278 = smul.addr %s274, 128
          %s279 = scalar_lea.hbm %s0, %s278
          %s280 = sshll.u32 %s273, 4
          %s281 = int_to_ptr.vmem [resolvable:$true] %s280
          %286 = dma.hbm_to_vmem [thread:$0]  %s279, 256, %s281, %s270, 128, 128, 8
        $region44: #{tpu_custom_call.1} parent=39 // pred_fallthru
          _
      $region40: #{tpu_custom_call.1} parent=5 // pred_fallthru
        _
      %p287 = scmp.le.s32.totalorder 1, %s21
      %p288 = scmp.lt.s32.totalorder %s21, 3
      %p289 = pnand %p287, %p288
      %p290 = pneg %p289
      // Predicated region
      $region45: #{tpu_custom_call.1} parent=5 // pred_check
        _
      $region46: #{tpu_custom_call.1} parent=5 // pred_check_branch
        %292 = sbr.rel (%p289) target = $region48
      $region47: #{tpu_custom_call.1} parent=5 // pred_region
        %s293 = ssub.s32 %s21, 1
        %s294 = sand.u32 %s34, 1
        %s295 = scalar_lea.sflag [#allocation3], %s294
        %s296 = sand.u32 %s34, 1
        %s297 = smul.addr %s296, 16
        %s298 = scalar_lea.vmem [#allocation2], %s297
        // Predicated region
        $region49: #{tpu_custom_call.1} parent=47 // pred_check
          %p299 = pneg %p47
        $region50: #{tpu_custom_call.1} parent=47 // pred_check_branch
          %301 = sbr.rel (%p299) target = $region52
        $region51: #{tpu_custom_call.1} parent=47 // pred_region
          %302 = dma.done %s295, 256
        $region52: #{tpu_custom_call.1} parent=47 // pred_fallthru
          _
        // Predicated region
        $region53: #{tpu_custom_call.1} parent=47 // pred_check
          %p303 = pneg %p68
        $region54: #{tpu_custom_call.1} parent=47 // pred_check_branch
          %305 = sbr.rel (%p303) target = $region56
        $region55: #{tpu_custom_call.1} parent=47 // pred_region
          %306 = dma.done [#allocation6], 256
        $region56: #{tpu_custom_call.1} parent=47 // pred_fallthru
          _
        // Predicated region
        $region57: #{tpu_custom_call.1} parent=47 // pred_check
          %p307 = pneg %p110
        $region58: #{tpu_custom_call.1} parent=47 // pred_check_branch
          %309 = sbr.rel (%p307) target = $region60
        $region59: #{tpu_custom_call.1} parent=47 // pred_region
          %310 = dma.done [#allocation6], 1024
        $region60: #{tpu_custom_call.1} parent=47 // pred_fallthru
          _
        // Predicated region
        $region61: #{tpu_custom_call.1} parent=47 // pred_check
          %p311 = pneg %p152
        $region62: #{tpu_custom_call.1} parent=47 // pred_check_branch
          %313 = sbr.rel (%p311) target = $region64
        $region63: #{tpu_custom_call.1} parent=47 // pred_region
          %314 = dma.done [#allocation9], 2048
        $region64: #{tpu_custom_call.1} parent=47 // pred_fallthru
          _
        %s315 = sand.u32 %s34, 1
        %s316 = scalar_lea.sflag [#allocation3], %s315
        %s317 = sand.u32 %s34, 1
        %s318 = smul.addr %s317, 16
        %s319 = scalar_lea.vmem [#allocation2], %s318
        %p320 = pneg %p47
        %p321 = pneg %p44
        %p322 = pneg %p68
        %p323 = pneg %p65
        %p324 = pneg %p89
        %p325 = pneg %p86
        %p326 = pneg %p110
        %p327 = pneg %p107
        %p328 = pneg %p131
        %p329 = pneg %p128
        %p330 = pneg %p152
        %p331 = pneg %p149
        %p332 = pneg %p173
        %p333 = pneg %p170
        %p334 = pneg %p199
        %p335 = pneg %p196
        %s336 = sand.u32 %s186, 1
        %s337 = scalar_lea.sflag [#allocation4], %s336
        %s338 = sand.u32 %s186, 1
        %s339 = smul.addr %s338, 32
        %s340 = scalar_lea.vmem [#allocation10], %s339
        %s341 = smul.u32 2, %s26
        %s342 = smul.u32 2, %s26
        %v344 = vld [vmem:[%s298] sm:$0xff]
        %v345 = vld [vmem:[%s298 + $0x8] sm:$0xff]
        %v346 = vpack.c.bf16 %v345, %v344
        %v347 = vld [vmem:[#allocation5] sm:$0xf]
        %v348 = vld [vmem:[#allocation5 + $0x4] sm:$0xf]
        %v349 = vld [vmem:[#allocation5 + $0x8] sm:$0xf]
        %v350 = vld [vmem:[#allocation5 + $0xc] sm:$0xf]
        %v351 = vld [vmem:[%s2] sm:$0x1]
        %v353 = vlaneseq
        %v354 = vshrl.u32 %v353, 7
        %v355 = vsub.s32 0, %v354
        %v356 = vrot.slane %v351, %v355
        %v362 = vunpack.c.l.b16 %v347
        %v363 = vunpack.c.l.b16 %v348
        %v364 = vunpack.c.l.b16 %v349
        %v365 = vunpack.c.l.b16 %v350
        %v366 = vpack.c.b16 %v363, %v362
        %v367 = vpack.c.b16 %v365, %v364
        %vm370 = vcmask 261120
        %v372 = vsel %vm370, %v346, 0
        %374 = vmatprep.subr.bf16.mxu0 0
        %375 = vmatpush1.bf16.msra.mxu0 %v366
        %376 = vmatprep.subr.bf16.mxu0 0
        %377 = vmatpush1.bf16.msra.mxu0 %v367
        %378 = vmatprep.subr.bf16.mxu0 0
        %379 = vmatpush1.bf16.msra.mxu0 0
        %380 = vmatprep.subr.bf16.mxu0 0
        %381 = vmatpush1.bf16.msra.mxu0 0
        %382 = vmatprep.subr.bf16.mxu0 0
        %383 = vmatpush1.bf16.msra.mxu0 0
        %384 = vmatprep.subr.bf16.mxu0 0
        %385 = vmatpush1.bf16.msra.mxu0 0
        %386 = vmatprep.subr.bf16.mxu0 0
        %387 = vmatpush1.bf16.msra.mxu0 0
        %388 = vmatprep.subr.bf16.mxu0 0
        %389 = vmatpush1.bf16.msra.mxu0 0
        %390 = vmatprep.subr.bf16.mxu0 0
        %391 = vmatpush1.bf16.msra.mxu0 0
        %392 = vmatprep.subr.bf16.mxu0 0
        %393 = vmatpush1.bf16.msra.mxu0 0
        %394 = vmatprep.subr.bf16.mxu0 0
        %395 = vmatpush1.bf16.msra.mxu0 0
        %396 = vmatprep.subr.bf16.mxu0 0
        %397 = vmatpush1.bf16.msra.mxu0 0
        %398 = vmatprep.subr.bf16.mxu0 0
        %399 = vmatpush1.bf16.msra.mxu0 0
        %400 = vmatprep.subr.bf16.mxu0 0
        %401 = vmatpush1.bf16.msra.mxu0 0
        %402 = vmatprep.subr.bf16.mxu0 0
        %403 = vmatpush1.bf16.msra.mxu0 0
        %404 = vmatprep.subr.bf16.mxu0 0
        %405 = vmatpush1.bf16.msra.mxu0 0
        %406 = vmatprep.mubr.bf16.mxu0 0
        %407 = vmatmul.mubr.bf16.gmra.mrb[0].mxu0 %v372
        %v408 = vpop.f32.mrb[0].mxu0
        %v409 = vadd.f32 %v356, %v408
        %v410 = vpop.f32.mrb[0].mxu0
        %v411 = vpop.f32.mrb[0].mxu0
        %v412 = vadd.f32 %v356, %v411
        %v413 = vpop.f32.mrb[0].mxu0
        %414 = vdwg.mxu0
        %v415 = vmax.f32 %v409, 0.0
        %v416 = vmax.f32 %v412, 0.0
        %v417 = vand.u32 2147483647, %v409
        %v418 = vand.u32 2147483647, %v412
        %v419 = vsub.f32 0.0, %v417
        %v420 = vsub.f32 0.0, %v418
        %v421 = vmul.f32 %v419, 1.442695
        %v422 = vpow.pop %v421
        %v423 = vmul.f32 %v420, 1.442695
        %v424 = vpow.pop %v423
        %v425 = vadd.f32 %v422, 1.0
        %v426 = vlog2.pop %v425
        %v427 = vmul.f32 %v426, 0.6931472
        %v428 = vmul.f32 -0.5, %v422
        %v429 = vadd.f32 %v428, 1.0
        %v430 = vmul.f32 %v429, %v422
        %v431 = vand.u32 2147483647, %v422
        %vm432 = vcmp.lt.f32.partialorder %v431, 0.0004427343
        %v433 = vsel %vm432, %v430, %v427
        %v434 = vadd.f32 %v424, 1.0
        %v435 = vlog2.pop %v434
        %v436 = vmul.f32 %v435, 0.6931472
        %v437 = vmul.f32 -0.5, %v424
        %v438 = vadd.f32 %v437, 1.0
        %v439 = vmul.f32 %v438, %v424
        %v440 = vand.u32 2147483647, %v424
        %vm441 = vcmp.lt.f32.partialorder %v440, 0.0004427343
        %v442 = vsel %vm441, %v439, %v436
        %v443 = vadd.f32 %v415, %v433
        %v444 = vadd.f32 %v416, %v442
        %v445 = vpack.c.bf16 %v444, %v443
        %v446 = vld [vmem:[#allocation7] sm:$0xf]
        %v447 = vld [vmem:[#allocation7 + $0x4] sm:$0xf]
        %v448 = vld [vmem:[#allocation7 + $0x8] sm:$0xf]
        %v449 = vld [vmem:[#allocation7 + $0xc] sm:$0xf]
        %v450 = vld [vmem:[#allocation7 + $0x10] sm:$0xf]
        %v451 = vld [vmem:[#allocation7 + $0x14] sm:$0xf]
        %v452 = vld [vmem:[#allocation7 + $0x18] sm:$0xf]
        %v453 = vld [vmem:[#allocation7 + $0x1c] sm:$0xf]
        %v454 = vld [vmem:[#allocation7 + $0x20] sm:$0xf]
        %v455 = vld [vmem:[#allocation7 + $0x24] sm:$0xf]
        %v456 = vld [vmem:[#allocation7 + $0x28] sm:$0xf]
        %v457 = vld [vmem:[#allocation7 + $0x2c] sm:$0xf]
        %v458 = vld [vmem:[#allocation7 + $0x30] sm:$0xf]
        %v459 = vld [vmem:[#allocation7 + $0x34] sm:$0xf]
        %v460 = vld [vmem:[#allocation7 + $0x38] sm:$0xf]
        %v461 = vld [vmem:[#allocation7 + $0x3c] sm:$0xf]
        %v462 = vld [vmem:[%s4] sm:$0x1]
        %v464 = vlaneseq
        %v465 = vshrl.u32 %v464, 7
        %v466 = vsub.s32 0, %v465
        %v467 = vrot.slane %v462, %v466
        %v485 = vunpack.c.l.b16 %v446
        %v486 = vunpack.c.l.b16 %v447
        %v487 = vunpack.c.l.b16 %v448
        %v488 = vunpack.c.l.b16 %v449
        %v489 = vunpack.c.l.b16 %v450
        %v490 = vunpack.c.l.b16 %v451
        %v491 = vunpack.c.l.b16 %v452
        %v492 = vunpack.c.l.b16 %v453
        %v493 = vunpack.c.l.b16 %v454
        %v494 = vunpack.c.l.b16 %v455
        %v495 = vunpack.c.l.b16 %v456
        %v496 = vunpack.c.l.b16 %v457
        %v497 = vunpack.c.l.b16 %v458
        %v498 = vunpack.c.l.b16 %v459
        %v499 = vunpack.c.l.b16 %v460
        %v500 = vunpack.c.l.b16 %v461
        %v501 = vpack.c.b16 %v486, %v485
        %v502 = vpack.c.b16 %v488, %v487
        %v503 = vpack.c.b16 %v490, %v489
        %v504 = vpack.c.b16 %v492, %v491
        %v505 = vpack.c.b16 %v494, %v493
        %v506 = vpack.c.b16 %v496, %v495
        %v507 = vpack.c.b16 %v498, %v497
        %v508 = vpack.c.b16 %v500, %v499
        %517 = vmatprep.subr.bf16.mxu0 0
        %518 = vmatpush1.bf16.msra.mxu0 %v501
        %519 = vmatprep.subr.bf16.mxu0 0
        %520 = vmatpush1.bf16.msra.mxu0 %v502
        %521 = vmatprep.subr.bf16.mxu0 0
        %522 = vmatpush1.bf16.msra.mxu0 %v503
        %523 = vmatprep.subr.bf16.mxu0 0
        %524 = vmatpush1.bf16.msra.mxu0 %v504
        %525 = vmatprep.subr.bf16.mxu0 0
        %526 = vmatpush1.bf16.msra.mxu0 %v505
        %527 = vmatprep.subr.bf16.mxu0 0
        %528 = vmatpush1.bf16.msra.mxu0 %v506
        %529 = vmatprep.subr.bf16.mxu0 0
        %530 = vmatpush1.bf16.msra.mxu0 %v507
        %531 = vmatprep.subr.bf16.mxu0 0
        %532 = vmatpush1.bf16.msra.mxu0 %v508
        %533 = vmatprep.subr.bf16.mxu0 0
        %534 = vmatpush1.bf16.msra.mxu0 0
        %535 = vmatprep.subr.bf16.mxu0 0
        %536 = vmatpush1.bf16.msra.mxu0 0
        %537 = vmatprep.subr.bf16.mxu0 0
        %538 = vmatpush1.bf16.msra.mxu0 0
        %539 = vmatprep.subr.bf16.mxu0 0
        %540 = vmatpush1.bf16.msra.mxu0 0
        %541 = vmatprep.subr.bf16.mxu0 0
        %542 = vmatpush1.bf16.msra.mxu0 0
        %543 = vmatprep.subr.bf16.mxu0 0
        %544 = vmatpush1.bf16.msra.mxu0 0
        %545 = vmatprep.subr.bf16.mxu0 0
        %546 = vmatpush1.bf16.msra.mxu0 0
        %547 = vmatprep.subr.bf16.mxu0 0
        %548 = vmatpush1.bf16.msra.mxu0 0
        %549 = vmatprep.mubr.bf16.mxu0 0
        %550 = vmatmul.mubr.bf16.gmra.mrb[0].mxu0 %v445
        %v551 = vpop.f32.mrb[0].mxu0
        %v552 = vadd.f32 %v467, %v551
        %v553 = vpop.f32.mrb[0].mxu0
        %v554 = vpop.f32.mrb[0].mxu0
        %v555 = vadd.f32 %v467, %v554
        %v556 = vpop.f32.mrb[0].mxu0
        %557 = vdwg.mxu0
        %v558 = vmax.f32 %v552, 0.0
        %v559 = vmax.f32 %v555, 0.0
        %v560 = vand.u32 2147483647, %v552
        %v561 = vand.u32 2147483647, %v555
        %v562 = vsub.f32 0.0, %v560
        %v563 = vsub.f32 0.0, %v561
        %v564 = vmul.f32 %v562, 1.442695
        %v565 = vpow.pop %v564
        %v566 = vmul.f32 %v563, 1.442695
        %v567 = vpow.pop %v566
        %v568 = vadd.f32 %v565, 1.0
        %v569 = vlog2.pop %v568
        %v570 = vmul.f32 %v569, 0.6931472
        %v571 = vmul.f32 -0.5, %v565
        %v572 = vadd.f32 %v571, 1.0
        %v573 = vmul.f32 %v572, %v565
        %v574 = vand.u32 2147483647, %v565
        %vm575 = vcmp.lt.f32.partialorder %v574, 0.0004427343
        %v576 = vsel %vm575, %v573, %v570
        %v577 = vadd.f32 %v567, 1.0
        %v578 = vlog2.pop %v577
        %v579 = vmul.f32 %v578, 0.6931472
        %v580 = vmul.f32 -0.5, %v567
        %v581 = vadd.f32 %v580, 1.0
        %v582 = vmul.f32 %v581, %v567
        %v583 = vand.u32 2147483647, %v567
        %vm584 = vcmp.lt.f32.partialorder %v583, 0.0004427343
        %v585 = vsel %vm584, %v582, %v579
        %v586 = vadd.f32 %v558, %v576
        %v587 = vadd.f32 %v559, %v585
        %v588 = vpack.c.bf16 %v587, %v586
        %v589 = vld [vmem:[#allocation8] sm:$0xff]
        %v590 = vld [vmem:[#allocation8 + $0x8] sm:$0xff]
        %v591 = vld [vmem:[#allocation8 + $0x10] sm:$0xff]
        %v592 = vld [vmem:[#allocation8 + $0x18] sm:$0xff]
        %v593 = vld [vmem:[#allocation8 + $0x20] sm:$0xff]
        %v594 = vld [vmem:[#allocation8 + $0x28] sm:$0xff]
        %v595 = vld [vmem:[#allocation8 + $0x30] sm:$0xff]
        %v596 = vld [vmem:[#allocation8 + $0x38] sm:$0xff]
        %v597 = vld [vmem:[#allocation8 + $0x40] sm:$0xff]
        %v598 = vld [vmem:[#allocation8 + $0x48] sm:$0xff]
        %v599 = vld [vmem:[#allocation8 + $0x50] sm:$0xff]
        %v600 = vld [vmem:[#allocation8 + $0x58] sm:$0xff]
        %v601 = vld [vmem:[#allocation8 + $0x60] sm:$0xff]
        %v602 = vld [vmem:[#allocation8 + $0x68] sm:$0xff]
        %v603 = vld [vmem:[#allocation8 + $0x70] sm:$0xff]
        %v604 = vld [vmem:[#allocation8 + $0x78] sm:$0xff]
        %v605 = vld [vmem:[%s6] sm:$0x3]
        %v607 = vlaneseq
        %v608 = vshrl.u32 %v607, 7
        %v609 = vsub.s32 0, %v608
        %v610 = vrot.slane %v605, %v609
        %v611 = vlaneseq
        %v612 = vshrl.u32 %v611, 7
        %v613 = vsub.s32 1, %v612
        %v614 = vrot.slane %v605, %v613
        %v633 = vunpack.c.l.b16 %v589
        %v634 = vunpack.c.h.b16 %v589
        %v635 = vunpack.c.l.b16 %v590
        %v636 = vunpack.c.h.b16 %v590
        %v637 = vunpack.c.l.b16 %v591
        %v638 = vunpack.c.h.b16 %v591
        %v639 = vunpack.c.l.b16 %v592
        %v640 = vunpack.c.h.b16 %v592
        %v641 = vunpack.c.l.b16 %v593
        %v642 = vunpack.c.h.b16 %v593
        %v643 = vunpack.c.l.b16 %v594
        %v644 = vunpack.c.h.b16 %v594
        %v645 = vunpack.c.l.b16 %v595
        %v646 = vunpack.c.h.b16 %v595
        %v647 = vunpack.c.l.b16 %v596
        %v648 = vunpack.c.h.b16 %v596
        %v649 = vunpack.c.l.b16 %v597
        %v650 = vunpack.c.h.b16 %v597
        %v651 = vunpack.c.l.b16 %v598
        %v652 = vunpack.c.h.b16 %v598
        %v653 = vunpack.c.l.b16 %v599
        %v654 = vunpack.c.h.b16 %v599
        %v655 = vunpack.c.l.b16 %v600
        %v656 = vunpack.c.h.b16 %v600
        %v657 = vunpack.c.l.b16 %v601
        %v658 = vunpack.c.h.b16 %v601
        %v659 = vunpack.c.l.b16 %v602
        %v660 = vunpack.c.h.b16 %v602
        %v661 = vunpack.c.l.b16 %v603
        %v662 = vunpack.c.h.b16 %v603
        %v663 = vunpack.c.l.b16 %v604
        %v664 = vunpack.c.h.b16 %v604
        %v665 = vpack.c.b16 %v635, %v633
        %v666 = vpack.c.b16 %v636, %v634
        %v667 = vpack.c.b16 %v639, %v637
        %v668 = vpack.c.b16 %v640, %v638
        %v669 = vpack.c.b16 %v643, %v641
        %v670 = vpack.c.b16 %v644, %v642
        %v671 = vpack.c.b16 %v647, %v645
        %v672 = vpack.c.b16 %v648, %v646
        %v673 = vpack.c.b16 %v651, %v649
        %v674 = vpack.c.b16 %v652, %v650
        %v675 = vpack.c.b16 %v655, %v653
        %v676 = vpack.c.b16 %v656, %v654
        %v677 = vpack.c.b16 %v659, %v657
        %v678 = vpack.c.b16 %v660, %v658
        %v679 = vpack.c.b16 %v663, %v661
        %v680 = vpack.c.b16 %v664, %v662
        %697 = vmatprep.subr.bf16.mxu0 %v666
        %698 = vmatpush1.bf16.msra.mxu0 %v665
        %699 = vmatprep.subr.bf16.mxu0 %v668
        %700 = vmatpush1.bf16.msra.mxu0 %v667
        %701 = vmatprep.subr.bf16.mxu0 %v670
        %702 = vmatpush1.bf16.msra.mxu0 %v669
        %703 = vmatprep.subr.bf16.mxu0 %v672
        %704 = vmatpush1.bf16.msra.mxu0 %v671
        %705 = vmatprep.subr.bf16.mxu0 %v674
        %706 = vmatpush1.bf16.msra.mxu0 %v673
        %707 = vmatprep.subr.bf16.mxu0 %v676
        %708 = vmatpush1.bf16.msra.mxu0 %v675
        %709 = vmatprep.subr.bf16.mxu0 %v678
        %710 = vmatpush1.bf16.msra.mxu0 %v677
        %711 = vmatprep.subr.bf16.mxu0 %v680
        %712 = vmatpush1.bf16.msra.mxu0 %v679
        %713 = vmatprep.subr.bf16.mxu0 0
        %714 = vmatpush1.bf16.msra.mxu0 0
        %715 = vmatprep.subr.bf16.mxu0 0
        %716 = vmatpush1.bf16.msra.mxu0 0
        %717 = vmatprep.subr.bf16.mxu0 0
        %718 = vmatpush1.bf16.msra.mxu0 0
        %719 = vmatprep.subr.bf16.mxu0 0
        %720 = vmatpush1.bf16.msra.mxu0 0
        %721 = vmatprep.subr.bf16.mxu0 0
        %722 = vmatpush1.bf16.msra.mxu0 0
        %723 = vmatprep.subr.bf16.mxu0 0
        %724 = vmatpush1.bf16.msra.mxu0 0
        %725 = vmatprep.subr.bf16.mxu0 0
        %726 = vmatpush1.bf16.msra.mxu0 0
        %727 = vmatprep.subr.bf16.mxu0 0
        %728 = vmatpush1.bf16.msra.mxu0 0
        %729 = vmatprep.mubr.bf16.mxu0 0
        %730 = vmatmul.mubr.bf16.gmra.mrb[0].mxu0 %v588
        %v731 = vpop.f32.mrb[0].mxu0
        %v732 = vadd.f32 %v610, %v731
        %v733 = vpop.f32.mrb[0].mxu0
        %v734 = vadd.f32 %v614, %v733
        %v735 = vpop.f32.mrb[0].mxu0
        %v736 = vadd.f32 %v610, %v735
        %v737 = vpop.f32.mrb[0].mxu0
        %v738 = vadd.f32 %v614, %v737
        %739 = vdwg.mxu0
        %740 = vst [vmem:[%s340] sm:$0xff] %v732
        %741 = vst [vmem:[%s340 + $0x10] sm:$0xff] %v736
        %v742 = vmul.f32 %v734, 1.442695
        %v743 = vpow.pop %v742
        %v744 = vmul.f32 %v738, 1.442695
        %v745 = vpow.pop %v744
        %746 = vst [vmem:[%s340 + $0x8] sm:$0xff] %v743
        %747 = vst [vmem:[%s340 + $0x18] sm:$0xff] %v745
        %s748 = sand.u32 %s186, 1
        %s749 = scalar_lea.sflag [#allocation4], %s748
        %s750 = sand.u32 %s186, 1
        %s751 = smul.addr %s750, 32
        %s752 = scalar_lea.vmem [#allocation10], %s751
        // Predicated region
        $region65: #{tpu_custom_call.1} parent=47 // pred_check
          %p753 = pneg %p196
        $region66: #{tpu_custom_call.1} parent=47 // pred_check_branch
          %755 = sbr.rel (%p753) target = $region68
        $region67: #{tpu_custom_call.1} parent=47 // pred_region
          %s756 = smul.u32 2, %s26
          %s758 = ssub.s32 512, 512
          %759 = vsyncadd %s749, %s758
          %s760 = smul.addr %s756, 2
          %s761 = smul.addr %s760, 128
          %s762 = scalar_lea.hbm %s7, %s761
          %s763 = sshll.u32 %s752, 4
          %s764 = int_to_ptr.vmem [resolvable:$true] %s763
          %769 = dma.vmem_to_hbm [thread:$0]  %s764, 512, %s762, %s749, 256, 256, 16
        $region68: #{tpu_custom_call.1} parent=47 // pred_fallthru
          _
      $region48: #{tpu_custom_call.1} parent=5 // pred_fallthru
        _
      %p770 = scmp.le.s32.totalorder 2, %s21
      // Predicated region
      $region69: #{tpu_custom_call.1} parent=5 // pred_check
        %p771 = pneg %p770
      $region70: #{tpu_custom_call.1} parent=5 // pred_check_branch
        %773 = sbr.rel (%p771) target = $region72
      $region71: #{tpu_custom_call.1} parent=5 // pred_region
        %s774 = ssub.s32 %s21, 2
        // Predicated region
        $region73: #{tpu_custom_call.1} parent=71 // pred_check
          %p775 = pneg %p202
        $region74: #{tpu_custom_call.1} parent=71 // pred_check_branch
          %777 = sbr.rel (%p775) target = $region76
        $region75: #{tpu_custom_call.1} parent=71 // pred_region
          %s778 = sand.u32 %s187, 1
          %s779 = scalar_lea.sflag [#allocation4], %s778
          %s780 = sand.u32 %s187, 1
          %s781 = smul.addr %s780, 32
          %s782 = scalar_lea.vmem [#allocation10], %s781
          %783 = dma.done %s779, 512
        $region76: #{tpu_custom_call.1} parent=71 // pred_fallthru
          _
      $region72: #{tpu_custom_call.1} parent=5 // pred_fallthru
        _
    $region6: #{tpu_custom_call.1} parent=1 // loop_footer
      %s25 = sadd.s32 1, %s21
    $region7: #{tpu_custom_call.1} parent=1 // loop_footer_branch
      %20 = sbr.rel target = $region3
    $region8: #{tpu_custom_call.1} parent=1 // loop_exit
      _
    %784 = vsyncpa [#allocation3], 1
    %s785 = scalar_lea.sflag [#allocation3], 1
    %786 = vsyncpa %s785, 1
    %787 = vsyncpa [#allocation6], 1
    %788 = vsyncpa [#allocation9], 1
    %789 = vsyncpa [#allocation4], 1
    %s790 = scalar_lea.sflag [#allocation4], 1
    %791 = vsyncpa %s790, 1

</llo_original>
